<compile_context>
chip_gen: v6e
topology: v6e:2x2x1
jax: 0.10.0
libtpu: 0.0.40
codegen_flags: <defaults>
</compile_context>

<pallas_src>
import math

import jax
import jax.numpy as jnp
from jax.experimental import pallas as pl
from jax.experimental.pallas import tpu as pltpu


def _elu(z):
    # nn.ELU(alpha=1.0) on f32. exp(z)-1 (not expm1): the bf16 recast that
    # follows dominates any small-|z| cancellation and exp always lowers.
    return jnp.where(z > 0, z, jnp.exp(z) - 1.0)


def mu0_kernel(x_ref, w1_ref, b1_ref, w2_ref, b2_ref, w3_ref, b3_ref,
               wl_ref, bl_ref, o_ref):
    h = x_ref[...]  # (TB, D) bf16 tile of the batch
    # BaseModel.DNN: three (Linear -> ELU -> Dropout[identity]) blocks.
    for w_ref, b_ref in ((w1_ref, b1_ref), (w2_ref, b2_ref), (w3_ref, b3_ref)):
        z = jnp.dot(h, w_ref[...], preferred_element_type=jnp.float32) + b_ref[...]
        h = _elu(z).astype(jnp.bfloat16)
    # logitLayer: wl @ h^T puts the TB logits on the lane axis -> lane-dense
    # (1, TB) store instead of a masked (TB, 1) store.
    pT = jax.lax.dot_general(
        wl_ref[...], h, (((1,), (1,)), ((), ())),
        preferred_element_type=jnp.float32)              # (8, TB), rows identical
    o_ref[...] = (pT[0:1, :] + bl_ref[0]).astype(o_ref.dtype)


def mu0_forward(x, params, *, tb=256):
    """x: [B, D].  params: dict from init_params.  Returns [B, 1] float32."""
    B, D = x.shape
    tb = max(128, (int(tb) // 128) * 128)   # lane-dense out tile: multiple of 128
    n_tiles = pl.cdiv(B, tb)
    Bp = n_tiles * tb

    xb = x.astype(jnp.bfloat16)
    if Bp != B:
        xb = jnp.pad(xb, ((0, Bp - B), (0, 0)))

    w1, b1, w2, b2, w3, b3, wl, bl = (
        params["w1"], params["b1"], params["w2"], params["b2"],
        params["w3"], params["b3"], params["wl"], params["bl"],
    )

    resident = lambda shape: pl.BlockSpec(shape, lambda i: (0, 0))

    # VMEM budget: resident weights/biases (x2 buffering worst case) +
    # double-buffered x tile + f32 temporaries; capped at 64 MiB for v7x.
    needed = (2 * (3 * D * D * 2 + 8 * D * 2 + 3 * D * 4)
              + 2 * tb * D * 2
              + 2 * tb * 4
              + 4 * tb * D * 4
              + (8 << 20))
    vmem_limit = int(min(max(needed, 32 << 20), 64 << 20))

    cost = pl.CostEstimate(
        flops=2 * Bp * D * D * 3 + 2 * Bp * D,
        transcendentals=3 * Bp * D,
        bytes_accessed=Bp * D * 2 + 3 * D * D * 2 + 8 * D * 2 + 3 * D * 4 + 4 + Bp * 4,
    )

    out = pl.pallas_call(
        mu0_kernel,
        out_shape=jax.ShapeDtypeStruct((1, Bp), jnp.float32),
        grid=(n_tiles,),
        in_specs=[
            pl.BlockSpec((tb, D), lambda i: (i, 0)),             # x: streamed tile
            resident((D, D)), resident((1, D)),                  # layer 1
            resident((D, D)), resident((1, D)),                  # layer 2
            resident((D, D)), resident((1, D)),                  # layer 3
            resident((8, D)),                                    # logit weight (row-replicated)
            pl.BlockSpec(memory_space=pltpu.MemorySpace.SMEM),   # logit bias scalar
        ],
        out_specs=pl.BlockSpec((1, tb), lambda i: (0, i)),
        compiler_params=pltpu.CompilerParams(
            dimension_semantics=("parallel",),
            vmem_limit_bytes=vmem_limit,
        ),
        cost_estimate=cost,
    )(xb, w1, b1, w2, b2, w3, b3, wl, bl)

    return out.reshape(Bp, 1)[:B]


def init_params(key, base_dim, *, weight_dtype=jnp.bfloat16):
    """Matches init_weights: W ~ N(0, 1/sqrt(in)), b = 0.
    Hidden weights are stored pre-transposed ([in, out]) in bf16 for the MXU;
    the logit weight is an (8, in) row-replicated matrix so the kernel can emit
    a lane-dense (1, TB) logit row; biases stay f32."""
    ks = jax.random.split(key, 4)

    def linear_t(k, in_dim, out_dim, dtype):
        std = 1.0 / math.sqrt(in_dim)
        w = jax.random.normal(k, (out_dim, in_dim), jnp.float32) * std  # torch [out, in]
        return w.T.astype(dtype), jnp.zeros((1, out_dim), jnp.float32)

    w1, b1 = linear_t(ks[0], base_dim, base_dim, weight_dtype)
    w2, b2 = linear_t(ks[1], base_dim, base_dim, weight_dtype)
    w3, b3 = linear_t(ks[2], base_dim, base_dim, weight_dtype)

    std = 1.0 / math.sqrt(base_dim)
    wl_row = jax.random.normal(ks[3], (1, base_dim), jnp.float32) * std  # torch [1, in]
    wl = jnp.tile(wl_row, (8, 1)).astype(weight_dtype)                   # (8, in)
    bl = jnp.zeros((1,), jnp.float32)
    return dict(w1=w1, b1=b1, w2=w2, b2=b2, w3=w3, b3=b3, wl=wl, bl=bl)


def reference_forward(x, params):
    """Pure-JAX reference mimicking the kernel's numerics (bf16 MXU operands,
    f32 accumulation)."""
    h = x.astype(jnp.bfloat16)
    for wk, bk in (("w1", "b1"), ("w2", "b2"), ("w3", "b3")):
        z = jnp.dot(h, params[wk], preferred_element_type=jnp.float32) + params[bk]
        h = jnp.where(z > 0, z, jnp.exp(z) - 1.0).astype(jnp.bfloat16)
    p = jnp.dot(h, params["wl"][0:1].T, preferred_element_type=jnp.float32)
    return p + params["bl"][0]


if __name__ == "__main__":
    key = jax.random.PRNGKey(0)
    k_x, k_p = jax.random.split(key)

    B, D = 1024, 256  # small, tile-aligned: grid of 4 batch tiles of 256
    x = jax.random.normal(k_x, (B, D), jnp.float32)
    params = init_params(k_p, D)

    out = mu0_forward(x, params, tb=256)
    out = jax.block_until_ready(out)

    ref = reference_forward(x, params)
    assert out.shape == (B, 1), out.shape
    assert jnp.allclose(out, ref, atol=2e-2, rtol=2e-2), (
        "mismatch vs JAX reference, max abs err = "
        + str(float(jnp.max(jnp.abs(out - ref)))))

    print("KERNEL_OK")
</pallas_src>

<mosaic_0001>
module attributes {stable_mosaic.version = 11 : i64} {
  func.func @mu0_kernel(%arg0: i32, %arg1: memref<256x256xbf16, #tpu.memory_space<vmem>>, %arg2: memref<256x256xbf16, #tpu.memory_space<vmem>>, %arg3: memref<1x256xf32, #tpu.memory_space<vmem>>, %arg4: memref<256x256xbf16, #tpu.memory_space<vmem>>, %arg5: memref<1x256xf32, #tpu.memory_space<vmem>>, %arg6: memref<256x256xbf16, #tpu.memory_space<vmem>>, %arg7: memref<1x256xf32, #tpu.memory_space<vmem>>, %arg8: memref<8x256xbf16, #tpu.memory_space<vmem>>, %arg9: memref<1xf32, #tpu.memory_space<smem>>, %arg10: memref<1x256xf32, #tpu.memory_space<vmem>>) attributes {dimension_semantics = [#tpu.dimension_semantics<parallel>], iteration_bounds = array<i64: 4>, scalar_prefetch = 0 : i64, scratch_operands = 0 : i64, tpu.core_type = #tpu.core_type<tc>, window_params = [{transform_indices = @transform_0, window_bounds = array<i64: 256, 256>}, {pipeline_mode = #tpu.pipeline_mode<synchronous>, transform_indices = @transform_1, window_bounds = array<i64: 256, 256>}, {pipeline_mode = #tpu.pipeline_mode<synchronous>, transform_indices = @transform_2, window_bounds = array<i64: 1, 256>}, {pipeline_mode = #tpu.pipeline_mode<synchronous>, transform_indices = @transform_3, window_bounds = array<i64: 256, 256>}, {pipeline_mode = #tpu.pipeline_mode<synchronous>, transform_indices = @transform_4, window_bounds = array<i64: 1, 256>}, {pipeline_mode = #tpu.pipeline_mode<synchronous>, transform_indices = @transform_5, window_bounds = array<i64: 256, 256>}, {pipeline_mode = #tpu.pipeline_mode<synchronous>, transform_indices = @transform_6, window_bounds = array<i64: 1, 256>}, {pipeline_mode = #tpu.pipeline_mode<synchronous>, transform_indices = @transform_7, window_bounds = array<i64: 8, 256>}, {transform_indices = @transform_8, window_bounds = array<i64: 1>}, {transform_indices = @transform_9, window_bounds = array<i64: 1, 256>}]} {
    %c0 = arith.constant 0 : index
    %c0_0 = arith.constant 0 : index
    %0 = vector.load %arg1[%c0, %c0_0] : memref<256x256xbf16, #tpu.memory_space<vmem>>, vector<256x256xbf16>
    %c0_1 = arith.constant 0 : index
    %c0_2 = arith.constant 0 : index
    %1 = vector.load %arg2[%c0_1, %c0_2] : memref<256x256xbf16, #tpu.memory_space<vmem>>, vector<256x256xbf16>
    %cst = arith.constant dense<0.000000e+00> : vector<256x256xf32>
    %2 = tpu.matmul %0, %1, %cst {dimension_numbers = #tpu.dot_dimension_numbers<[1], [0], [0], [1], [0, 0, 1, 1], [], []>} : vector<256x256xbf16>, vector<256x256xbf16>, vector<256x256xf32> -> vector<256x256xf32>
    %c0_3 = arith.constant 0 : index
    %c0_4 = arith.constant 0 : index
    %3 = vector.load %arg3[%c0_3, %c0_4] : memref<1x256xf32, #tpu.memory_space<vmem>>, vector<1x256xf32>
    %4 = vector.broadcast %3 : vector<1x256xf32> to vector<256x256xf32>
    %5 = arith.addf %2, %4 : vector<256x256xf32>
    %cst_5 = arith.constant 0.000000e+00 : f32
    %6 = vector.broadcast %cst_5 : f32 to vector<256x256xf32>
    %7 = arith.cmpf ogt, %5, %6 : vector<256x256xf32>
    %8 = math.exp %5 : vector<256x256xf32>
    %cst_6 = arith.constant 1.000000e+00 : f32
    %9 = vector.broadcast %cst_6 : f32 to vector<256x256xf32>
    %10 = arith.subf %8, %9 : vector<256x256xf32>
    %11 = arith.select %7, %5, %10 : vector<256x256xi1>, vector<256x256xf32>
    %12 = arith.truncf %11 : vector<256x256xf32> to vector<256x256xbf16>
    %c0_7 = arith.constant 0 : index
    %c0_8 = arith.constant 0 : index
    %13 = vector.load %arg4[%c0_7, %c0_8] : memref<256x256xbf16, #tpu.memory_space<vmem>>, vector<256x256xbf16>
    %cst_9 = arith.constant dense<0.000000e+00> : vector<256x256xf32>
    %14 = tpu.matmul %12, %13, %cst_9 {dimension_numbers = #tpu.dot_dimension_numbers<[1], [0], [0], [1], [0, 0, 1, 1], [], []>} : vector<256x256xbf16>, vector<256x256xbf16>, vector<256x256xf32> -> vector<256x256xf32>
    %c0_10 = arith.constant 0 : index
    %c0_11 = arith.constant 0 : index
    %15 = vector.load %arg5[%c0_10, %c0_11] : memref<1x256xf32, #tpu.memory_space<vmem>>, vector<1x256xf32>
    %16 = vector.broadcast %15 : vector<1x256xf32> to vector<256x256xf32>
    %17 = arith.addf %14, %16 : vector<256x256xf32>
    %cst_12 = arith.constant 0.000000e+00 : f32
    %18 = vector.broadcast %cst_12 : f32 to vector<256x256xf32>
    %19 = arith.cmpf ogt, %17, %18 : vector<256x256xf32>
    %20 = math.exp %17 : vector<256x256xf32>
    %cst_13 = arith.constant 1.000000e+00 : f32
    %21 = vector.broadcast %cst_13 : f32 to vector<256x256xf32>
    %22 = arith.subf %20, %21 : vector<256x256xf32>
    %23 = arith.select %19, %17, %22 : vector<256x256xi1>, vector<256x256xf32>
    %24 = arith.truncf %23 : vector<256x256xf32> to vector<256x256xbf16>
    %c0_14 = arith.constant 0 : index
    %c0_15 = arith.constant 0 : index
    %25 = vector.load %arg6[%c0_14, %c0_15] : memref<256x256xbf16, #tpu.memory_space<vmem>>, vector<256x256xbf16>
    %cst_16 = arith.constant dense<0.000000e+00> : vector<256x256xf32>
    %26 = tpu.matmul %24, %25, %cst_16 {dimension_numbers = #tpu.dot_dimension_numbers<[1], [0], [0], [1], [0, 0, 1, 1], [], []>} : vector<256x256xbf16>, vector<256x256xbf16>, vector<256x256xf32> -> vector<256x256xf32>
    %c0_17 = arith.constant 0 : index
    %c0_18 = arith.constant 0 : index
    %27 = vector.load %arg7[%c0_17, %c0_18] : memref<1x256xf32, #tpu.memory_space<vmem>>, vector<1x256xf32>
    %28 = vector.broadcast %27 : vector<1x256xf32> to vector<256x256xf32>
    %29 = arith.addf %26, %28 : vector<256x256xf32>
    %cst_19 = arith.constant 0.000000e+00 : f32
    %30 = vector.broadcast %cst_19 : f32 to vector<256x256xf32>
    %31 = arith.cmpf ogt, %29, %30 : vector<256x256xf32>
    %32 = math.exp %29 : vector<256x256xf32>
    %cst_20 = arith.constant 1.000000e+00 : f32
    %33 = vector.broadcast %cst_20 : f32 to vector<256x256xf32>
    %34 = arith.subf %32, %33 : vector<256x256xf32>
    %35 = arith.select %31, %29, %34 : vector<256x256xi1>, vector<256x256xf32>
    %36 = arith.truncf %35 : vector<256x256xf32> to vector<256x256xbf16>
    %c0_21 = arith.constant 0 : index
    %c0_22 = arith.constant 0 : index
    %37 = vector.load %arg8[%c0_21, %c0_22] : memref<8x256xbf16, #tpu.memory_space<vmem>>, vector<8x256xbf16>
    %cst_23 = arith.constant dense<0.000000e+00> : vector<8x256xf32>
    %38 = tpu.matmul %37, %36, %cst_23 {dimension_numbers = #tpu.dot_dimension_numbers<[1], [1], [0], [0], [0, 0, 1, 0], [], []>} : vector<8x256xbf16>, vector<256x256xbf16>, vector<8x256xf32> -> vector<8x256xf32>
    %39 = vector.extract_strided_slice %38 {offsets = [0, 0], sizes = [1, 256], strides = [1, 1]} : vector<8x256xf32> to vector<1x256xf32>
    %c0_24 = arith.constant 0 : index
    %40 = memref.load %arg9[%c0_24] : memref<1xf32, #tpu.memory_space<smem>>
    %41 = vector.broadcast %40 : f32 to vector<1x256xf32>
    %42 = arith.addf %39, %41 : vector<1x256xf32>
    %c0_25 = arith.constant 0 : index
    %c0_26 = arith.constant 0 : index
    %43 = vector.load %arg10[%c0_25, %c0_26] : memref<1x256xf32, #tpu.memory_space<vmem>>, vector<1x256xf32>
    tpu.vector_store %arg10[%c0_25, %c0_26], %42 {strides = array<i32>} : memref<1x256xf32, #tpu.memory_space<vmem>>, vector<1x256xf32>,
    return
  }
  func.func @transform_0(%arg0: i32) -> (i32, i32) {
    %c0_i32 = arith.constant 0 : i32
    %c0_i32_0 = arith.constant 0 : i32
    return %arg0, %c0_i32 : i32, i32
  }
  func.func @transform_1(%arg0: i32) -> (i32, i32) {
    %c0_i32 = arith.constant 0 : i32
    %c0_i32_0 = arith.constant 0 : i32
    %c0_i32_1 = arith.constant 0 : i32
    return %c0_i32, %c0_i32_0 : i32, i32
  }
  func.func @transform_2(%arg0: i32) -> (i32, i32) {
    %c0_i32 = arith.constant 0 : i32
    %c0_i32_0 = arith.constant 0 : i32
    %c0_i32_1 = arith.constant 0 : i32
    return %c0_i32, %c0_i32_0 : i32, i32
  }
  func.func @transform_3(%arg0: i32) -> (i32, i32) {
    %c0_i32 = arith.constant 0 : i32
    %c0_i32_0 = arith.constant 0 : i32
    %c0_i32_1 = arith.constant 0 : i32
    return %c0_i32, %c0_i32_0 : i32, i32
  }
  func.func @transform_4(%arg0: i32) -> (i32, i32) {
    %c0_i32 = arith.constant 0 : i32
    %c0_i32_0 = arith.constant 0 : i32
    %c0_i32_1 = arith.constant 0 : i32
    return %c0_i32, %c0_i32_0 : i32, i32
  }
  func.func @transform_5(%arg0: i32) -> (i32, i32) {
    %c0_i32 = arith.constant 0 : i32
    %c0_i32_0 = arith.constant 0 : i32
    %c0_i32_1 = arith.constant 0 : i32
    return %c0_i32, %c0_i32_0 : i32, i32
  }
  func.func @transform_6(%arg0: i32) -> (i32, i32) {
    %c0_i32 = arith.constant 0 : i32
    %c0_i32_0 = arith.constant 0 : i32
    %c0_i32_1 = arith.constant 0 : i32
    return %c0_i32, %c0_i32_0 : i32, i32
  }
  func.func @transform_7(%arg0: i32) -> (i32, i32) {
    %c0_i32 = arith.constant 0 : i32
    %c0_i32_0 = arith.constant 0 : i32
    %c0_i32_1 = arith.constant 0 : i32
    return %c0_i32, %c0_i32_0 : i32, i32
  }
  func.func @transform_8(%arg0: i32) -> i32 {
    %c0_i32 = arith.constant 0 : i32
    %c0_i32_0 = arith.constant 0 : i32
    return %c0_i32 : i32
  }
  func.func @transform_9(%arg0: i32) -> (i32, i32) {
    %c0_i32 = arith.constant 0 : i32
    %c0_i32_0 = arith.constant 0 : i32
    return %c0_i32, %arg0 : i32, i32
  }
}

</mosaic_0001>

<llo_original>
// kernel: tpu_custom_call.1
$region0: #{tpu_custom_call.1}
  #allocation0 [shape = 'u32[]', space=smem, size = 0x4, offset = 0x4, fixed_abs, tag = 'smem constant byte address 0x4 - core index']
  #allocation1 [shape = 'u32[144,128]{1,0:T(1,128)}', space=vmem, size = 0x12000, scoped, tag = 'internal scratch']
  #allocation2 [shape = 'f32[1]{0:T(128)S(6)}', space=smem, size = 0x200, scoped, tag = 'scoped memory for tpu_custom_call.1']
  %s0 = inlined_call_operand.hbm [shape: bf16[1024,256], index: 0, kind: input, shape index: {}]
  %s1 = inlined_call_operand.hbm [shape: bf16[256,256], index: 1, kind: input, shape index: {}]
  %s2 = inlined_call_operand.vmem [shape: f32[1,256], index: 2, kind: input, shape index: {}]
  %s3 = inlined_call_operand.hbm [shape: bf16[256,256], index: 3, kind: input, shape index: {}]
  %s4 = inlined_call_operand.vmem [shape: f32[1,256], index: 4, kind: input, shape index: {}]
  %s5 = inlined_call_operand.hbm [shape: bf16[256,256], index: 5, kind: input, shape index: {}]
  %s6 = inlined_call_operand.vmem [shape: f32[1,256], index: 6, kind: input, shape index: {}]
  %s7 = inlined_call_operand.vmem [shape: bf16[8,256], index: 7, kind: input, shape index: {}]
  %s8 = inlined_call_operand.<no memory space> [shape: f32[1], index: 8, kind: input, shape index: {}]
  %s9 = inlined_call_operand.hbm [shape: f32[1,1024], index: 9, kind: output, shape index: {}]
  %s10 = sld [smem:[#allocation0]]
  $region85: #{tpu_custom_call.1} parent=0
    _
  %s12 = ssub.s32 1, %s10
  %s13 = scalar_select 0, %s12, %s10
  %14 = sst [smem:[#allocation2]] %s8
  $region1: #{tpu_custom_call.1} parent=0
    #allocation3 [shape = 'u8[262144]{0}', space=vmem, size = 0x40000, scoped, tag = 'input window, operand 0']
    #allocation4 [shape = 's32[2]{0}', space=sflag, size = 0x8, scoped, tag = 'scoped memory for tpu_custom_call.1']
    #allocation5 [shape = 's32[2]{0}', space=sflag, size = 0x8, scoped, tag = 'scoped memory for tpu_custom_call.1']
    #allocation6 [shape = 'u8[131072]{0}', space=vmem, size = 0x20000, scoped, tag = 'input window, operand 1, single buffered']
    #allocation7 [shape = 's32[1]{0}', space=sflag, size = 0x4, scoped, tag = 'scoped memory for tpu_custom_call.1']
    #allocation8 [shape = 'u8[131072]{0}', space=vmem, size = 0x20000, scoped, tag = 'input window, operand 3, single buffered']
    #allocation9 [shape = 'u8[131072]{0}', space=vmem, size = 0x20000, scoped, tag = 'input window, operand 5, single buffered']
    #allocation10 [shape = 's32[1]{0}', space=sflag, size = 0x4, scoped, tag = 'scoped memory for tpu_custom_call.1']
    #allocation11 [shape = 'u8[2048]{0}', space=vmem, size = 0x800, scoped, tag = 'output window, operand 0']
    %15 = vsyncpa [#allocation4], 0
    %s16 = scalar_lea.sflag [#allocation4], 1
    %17 = vsyncpa %s16, 0
    %18 = vsyncpa [#allocation7], 0
    %19 = vsyncpa [#allocation10], 0
    %20 = vsyncpa [#allocation5], 0
    %s21 = scalar_lea.sflag [#allocation5], 1
    %22 = vsyncpa %s21, 0
    loop: start=0, step=1, limit=6
    $region2: #{tpu_custom_call.1} parent=1 // loop_pre_header
      _
    $region3: #{tpu_custom_call.1} parent=1 // loop_header
      %s24 = sphi 0, %s28
      %p25 = scmp.ge.s32.totalorder %s24, 6
      %s34 = sphi 0, %s36
      %s37 = sphi 0, %s34
      %s38 = sphi 0, %s37
      %s54 = sphi 0, %s38
      %s58 = sphi 0, %s58
      %s60 = sphi 0, %s58
      %s61 = sphi 0, %s60
      %s75 = sphi 0, %s61
      %s79 = sphi 0, %s79
      %s81 = sphi 0, %s79
      %s82 = sphi 0, %s81
      %s96 = sphi 0, %s82
      %s100 = sphi 0, %s100
      %s102 = sphi 0, %s100
      %s103 = sphi 0, %s102
      %s117 = sphi 0, %s103
      %s121 = sphi 0, %s121
      %s123 = sphi 0, %s121
      %s124 = sphi 0, %s123
      %s138 = sphi 0, %s124
      %s142 = sphi 0, %s142
      %s144 = sphi 0, %s142
      %s145 = sphi 0, %s144
      %s159 = sphi 0, %s145
      %s163 = sphi 0, %s163
      %s165 = sphi 0, %s163
      %s166 = sphi 0, %s165
      %s180 = sphi 0, %s166
      %s184 = sphi 0, %s184
      %s186 = sphi 0, %s184
      %s187 = sphi 0, %s186
      %s201 = sphi 0, %s187
      %s205 = sphi 0, %s205
      %s207 = sphi 0, %s205
      %s208 = sphi 0, %s207
      %s222 = sphi 0, %s208
      %s228 = sphi 0, %s230
      %s231 = sphi 0, %s228
      %s232 = sphi 0, %s231
      %s248 = sphi 0, %s232
    $region4: #{tpu_custom_call.1} parent=1 // loop_header_branch
      %27 = sbr.rel (%p25) target = $region8
    $region5: #{tpu_custom_call.1} parent=1 // loop_body
      %s29 = ssub.s32 %s24, 1
      %s30 = ssub.s32 %s24, 2
      %s31 = sadd.s32 %s24, 1
      %s32 = ssub.s32 %s24, %s31
      %p33 = scmp.eq.s32.totalorder %s32, 0
      %s35 = sadd.s32 %s34, 1
      %s36 = scalar_select %p33, %s34, %s35
      %p39 = pneg %p33
      %p40 = scmp.eq.s32.totalorder %s24, 3
      %p41 = por %p39, %p40
      %p42 = scmp.ne.s32.totalorder %s34, %s37
      %p43 = scmp.eq.s32.totalorder %s24, 0
      %p44 = por %p42, %p43
      %p45 = scmp.ne.s32.totalorder %s34, %s37
      %p46 = scmp.eq.s32.totalorder %s29, 3
      %p47 = por %p45, %p46
      %p48 = scmp.ne.s32.totalorder %s37, %s38
      %p49 = scmp.eq.s32.totalorder %s29, 0
      %p50 = por %p48, %p49
      %p51 = scmp.ne.s32.totalorder %s37, %s38
      %p52 = scmp.eq.s32.totalorder %s30, 3
      %p53 = por %p51, %p52
      %p55 = scmp.ne.s32.totalorder %s38, %s54
      %p56 = scmp.eq.s32.totalorder %s30, 0
      %p57 = por %p55, %p56
      %s59 = sadd.s32 %s58, 1
      %p62 = scmp.eq.s32.totalorder %s24, 3
      %p63 = scmp.ne.s32.totalorder %s58, %s60
      %p64 = scmp.eq.s32.totalorder %s24, 0
      %p65 = por %p63, %p64
      %p66 = scmp.ne.s32.totalorder %s58, %s60
      %p67 = scmp.eq.s32.totalorder %s29, 3
      %p68 = por %p66, %p67
      %p69 = scmp.ne.s32.totalorder %s60, %s61
      %p70 = scmp.eq.s32.totalorder %s29, 0
      %p71 = por %p69, %p70
      %p72 = scmp.ne.s32.totalorder %s60, %s61
      %p73 = scmp.eq.s32.totalorder %s30, 3
      %p74 = por %p72, %p73
      %p76 = scmp.ne.s32.totalorder %s61, %s75
      %p77 = scmp.eq.s32.totalorder %s30, 0
      %p78 = por %p76, %p77
      %s80 = sadd.s32 %s79, 1
      %p83 = scmp.eq.s32.totalorder %s24, 3
      %p84 = scmp.ne.s32.totalorder %s79, %s81
      %p85 = scmp.eq.s32.totalorder %s24, 0
      %p86 = por %p84, %p85
      %p87 = scmp.ne.s32.totalorder %s79, %s81
      %p88 = scmp.eq.s32.totalorder %s29, 3
      %p89 = por %p87, %p88
      %p90 = scmp.ne.s32.totalorder %s81, %s82
      %p91 = scmp.eq.s32.totalorder %s29, 0
      %p92 = por %p90, %p91
      %p93 = scmp.ne.s32.totalorder %s81, %s82
      %p94 = scmp.eq.s32.totalorder %s30, 3
      %p95 = por %p93, %p94
      %p97 = scmp.ne.s32.totalorder %s82, %s96
      %p98 = scmp.eq.s32.totalorder %s30, 0
      %p99 = por %p97, %p98
      %s101 = sadd.s32 %s100, 1
      %p104 = scmp.eq.s32.totalorder %s24, 3
      %p105 = scmp.ne.s32.totalorder %s100, %s102
      %p106 = scmp.eq.s32.totalorder %s24, 0
      %p107 = por %p105, %p106
      %p108 = scmp.ne.s32.totalorder %s100, %s102
      %p109 = scmp.eq.s32.totalorder %s29, 3
      %p110 = por %p108, %p109
      %p111 = scmp.ne.s32.totalorder %s102, %s103
      %p112 = scmp.eq.s32.totalorder %s29, 0
      %p113 = por %p111, %p112
      %p114 = scmp.ne.s32.totalorder %s102, %s103
      %p115 = scmp.eq.s32.totalorder %s30, 3
      %p116 = por %p114, %p115
      %p118 = scmp.ne.s32.totalorder %s103, %s117
      %p119 = scmp.eq.s32.totalorder %s30, 0
      %p120 = por %p118, %p119
      %s122 = sadd.s32 %s121, 1
      %p125 = scmp.eq.s32.totalorder %s24, 3
      %p126 = scmp.ne.s32.totalorder %s121, %s123
      %p127 = scmp.eq.s32.totalorder %s24, 0
      %p128 = por %p126, %p127
      %p129 = scmp.ne.s32.totalorder %s121, %s123
      %p130 = scmp.eq.s32.totalorder %s29, 3
      %p131 = por %p129, %p130
      %p132 = scmp.ne.s32.totalorder %s123, %s124
      %p133 = scmp.eq.s32.totalorder %s29, 0
      %p134 = por %p132, %p133
      %p135 = scmp.ne.s32.totalorder %s123, %s124
      %p136 = scmp.eq.s32.totalorder %s30, 3
      %p137 = por %p135, %p136
      %p139 = scmp.ne.s32.totalorder %s124, %s138
      %p140 = scmp.eq.s32.totalorder %s30, 0
      %p141 = por %p139, %p140
      %s143 = sadd.s32 %s142, 1
      %p146 = scmp.eq.s32.totalorder %s24, 3
      %p147 = scmp.ne.s32.totalorder %s142, %s144
      %p148 = scmp.eq.s32.totalorder %s24, 0
      %p149 = por %p147, %p148
      %p150 = scmp.ne.s32.totalorder %s142, %s144
      %p151 = scmp.eq.s32.totalorder %s29, 3
      %p152 = por %p150, %p151
      %p153 = scmp.ne.s32.totalorder %s144, %s145
      %p154 = scmp.eq.s32.totalorder %s29, 0
      %p155 = por %p153, %p154
      %p156 = scmp.ne.s32.totalorder %s144, %s145
      %p157 = scmp.eq.s32.totalorder %s30, 3
      %p158 = por %p156, %p157
      %p160 = scmp.ne.s32.totalorder %s145, %s159
      %p161 = scmp.eq.s32.totalorder %s30, 0
      %p162 = por %p160, %p161
      %s164 = sadd.s32 %s163, 1
      %p167 = scmp.eq.s32.totalorder %s24, 3
      %p168 = scmp.ne.s32.totalorder %s163, %s165
      %p169 = scmp.eq.s32.totalorder %s24, 0
      %p170 = por %p168, %p169
      %p171 = scmp.ne.s32.totalorder %s163, %s165
      %p172 = scmp.eq.s32.totalorder %s29, 3
      %p173 = por %p171, %p172
      %p174 = scmp.ne.s32.totalorder %s165, %s166
      %p175 = scmp.eq.s32.totalorder %s29, 0
      %p176 = por %p174, %p175
      %p177 = scmp.ne.s32.totalorder %s165, %s166
      %p178 = scmp.eq.s32.totalorder %s30, 3
      %p179 = por %p177, %p178
      %p181 = scmp.ne.s32.totalorder %s166, %s180
      %p182 = scmp.eq.s32.totalorder %s30, 0
      %p183 = por %p181, %p182
      %s185 = sadd.s32 %s184, 1
      %p188 = scmp.eq.s32.totalorder %s24, 3
      %p189 = scmp.ne.s32.totalorder %s184, %s186
      %p190 = scmp.eq.s32.totalorder %s24, 0
      %p191 = por %p189, %p190
      %p192 = scmp.ne.s32.totalorder %s184, %s186
      %p193 = scmp.eq.s32.totalorder %s29, 3
      %p194 = por %p192, %p193
      %p195 = scmp.ne.s32.totalorder %s186, %s187
      %p196 = scmp.eq.s32.totalorder %s29, 0
      %p197 = por %p195, %p196
      %p198 = scmp.ne.s32.totalorder %s186, %s187
      %p199 = scmp.eq.s32.totalorder %s30, 3
      %p200 = por %p198, %p199
      %p202 = scmp.ne.s32.totalorder %s187, %s201
      %p203 = scmp.eq.s32.totalorder %s30, 0
      %p204 = por %p202, %p203
      %s206 = sadd.s32 %s205, 1
      %p209 = scmp.eq.s32.totalorder %s24, 3
      %p210 = scmp.ne.s32.totalorder %s205, %s207
      %p211 = scmp.eq.s32.totalorder %s24, 0
      %p212 = por %p210, %p211
      %p213 = scmp.ne.s32.totalorder %s205, %s207
      %p214 = scmp.eq.s32.totalorder %s29, 3
      %p215 = por %p213, %p214
      %p216 = scmp.ne.s32.totalorder %s207, %s208
      %p217 = scmp.eq.s32.totalorder %s29, 0
      %p218 = por %p216, %p217
      %p219 = scmp.ne.s32.totalorder %s207, %s208
      %p220 = scmp.eq.s32.totalorder %s30, 3
      %p221 = por %p219, %p220
      %p223 = scmp.ne.s32.totalorder %s208, %s222
      %p224 = scmp.eq.s32.totalorder %s30, 0
      %p225 = por %p223, %p224
      %s226 = ssub.s32 %s24, %s31
      %p227 = scmp.eq.s32.totalorder %s226, 0
      %s229 = sadd.s32 %s228, 1
      %s230 = scalar_select %p227, %s228, %s229
      %p233 = pneg %p227
      %p234 = scmp.eq.s32.totalorder %s24, 3
      %p235 = por %p233, %p234
      %p236 = scmp.ne.s32.totalorder %s228, %s231
      %p237 = scmp.eq.s32.totalorder %s24, 0
      %p238 = por %p236, %p237
      %p239 = scmp.ne.s32.totalorder %s228, %s231
      %p240 = scmp.eq.s32.totalorder %s29, 3
      %p241 = por %p239, %p240
      %p242 = scmp.ne.s32.totalorder %s231, %s232
      %p243 = scmp.eq.s32.totalorder %s29, 0
      %p244 = por %p242, %p243
      %p245 = scmp.ne.s32.totalorder %s231, %s232
      %p246 = scmp.eq.s32.totalorder %s30, 3
      %p247 = por %p245, %p246
      %p249 = scmp.ne.s32.totalorder %s232, %s248
      %p250 = scmp.eq.s32.totalorder %s30, 0
      %p251 = por %p249, %p250
      %p252 = scmp.le.s32.totalorder 1, %s24
      %p253 = scmp.lt.s32.totalorder %s24, 5
      %p254 = pnand %p252, %p253
      %p255 = pneg %p254
      // Predicated region
      $region9: #{tpu_custom_call.1} parent=5 // pred_check
        _
      $region10: #{tpu_custom_call.1} parent=5 // pred_check_branch
        %257 = sbr.rel (%p254) target = $region12
      $region11: #{tpu_custom_call.1} parent=5 // pred_region
        %s258 = ssub.s32 %s24, 1
        // Predicated region
        $region13: #{tpu_custom_call.1} parent=11 // pred_check
          %p259 = pneg %p71
        $region14: #{tpu_custom_call.1} parent=11 // pred_check_branch
          %261 = sbr.rel (%p259) target = $region16
        $region15: #{tpu_custom_call.1} parent=11 // pred_region
          %s263 = ssub.s32 4096, 4096
          %264 = vsyncadd [#allocation7], %s263
          %s265 = sshll.u32 [#allocation6], 4
          %s266 = int_to_ptr.vmem [resolvable:$true] %s265
          %271 = dma.hbm_to_vmem [thread:$0]  %s1, 4096, %s266, [#allocation7], 128, 128, 8
        $region16: #{tpu_custom_call.1} parent=11 // pred_fallthru
          _
        // Predicated region
        $region17: #{tpu_custom_call.1} parent=11 // pred_check
          %p272 = pneg %p92
        $region18: #{tpu_custom_call.1} parent=11 // pred_check_branch
          %274 = sbr.rel (%p272) target = $region20
        $region19: #{tpu_custom_call.1} parent=11 // pred_region
          _
        $region20: #{tpu_custom_call.1} parent=11 // pred_fallthru
          _
        // Predicated region
        $region21: #{tpu_custom_call.1} parent=11 // pred_check
          %p275 = pneg %p113
        $region22: #{tpu_custom_call.1} parent=11 // pred_check_branch
          %277 = sbr.rel (%p275) target = $region24
        $region23: #{tpu_custom_call.1} parent=11 // pred_region
          %s279 = ssub.s32 4096, 4096
          %280 = vsyncadd [#allocation7], %s279
          %s281 = sshll.u32 [#allocation8], 4
          %s282 = int_to_ptr.vmem [resolvable:$true] %s281
          %287 = dma.hbm_to_vmem [thread:$0]  %s3, 4096, %s282, [#allocation7], 128, 128, 8
        $region24: #{tpu_custom_call.1} parent=11 // pred_fallthru
          _
        // Predicated region
        $region25: #{tpu_custom_call.1} parent=11 // pred_check
          %p288 = pneg %p134
        $region26: #{tpu_custom_call.1} parent=11 // pred_check_branch
          %290 = sbr.rel (%p288) target = $region28
        $region27: #{tpu_custom_call.1} parent=11 // pred_region
          _
        $region28: #{tpu_custom_call.1} parent=11 // pred_fallthru
          _
        // Predicated region
        $region29: #{tpu_custom_call.1} parent=11 // pred_check
          %p291 = pneg %p155
        $region30: #{tpu_custom_call.1} parent=11 // pred_check_branch
          %293 = sbr.rel (%p291) target = $region32
        $region31: #{tpu_custom_call.1} parent=11 // pred_region
          %s295 = ssub.s32 4096, 4096
          %296 = vsyncadd [#allocation10], %s295
          %s297 = sshll.u32 [#allocation9], 4
          %s298 = int_to_ptr.vmem [resolvable:$true] %s297
          %303 = dma.hbm_to_vmem [thread:$0]  %s5, 4096, %s298, [#allocation10], 128, 128, 8
        $region32: #{tpu_custom_call.1} parent=11 // pred_fallthru
          _
        // Predicated region
        $region33: #{tpu_custom_call.1} parent=11 // pred_check
          %p304 = pneg %p176
        $region34: #{tpu_custom_call.1} parent=11 // pred_check_branch
          %306 = sbr.rel (%p304) target = $region36
        $region35: #{tpu_custom_call.1} parent=11 // pred_region
          _
        $region36: #{tpu_custom_call.1} parent=11 // pred_fallthru
          _
        // Predicated region
        $region37: #{tpu_custom_call.1} parent=11 // pred_check
          %p307 = pneg %p197
        $region38: #{tpu_custom_call.1} parent=11 // pred_check_branch
          %309 = sbr.rel (%p307) target = $region40
        $region39: #{tpu_custom_call.1} parent=11 // pred_region
          _
        $region40: #{tpu_custom_call.1} parent=11 // pred_fallthru
          _
        // Predicated region
        $region41: #{tpu_custom_call.1} parent=11 // pred_check
          %p310 = pneg %p218
        $region42: #{tpu_custom_call.1} parent=11 // pred_check_branch
          %312 = sbr.rel (%p310) target = $region44
        $region43: #{tpu_custom_call.1} parent=11 // pred_region
          _
        $region44: #{tpu_custom_call.1} parent=11 // pred_fallthru
          _
      $region12: #{tpu_custom_call.1} parent=5 // pred_fallthru
        _
      %p313 = scmp.lt.s32.totalorder %s24, 4
      // Predicated region
      $region45: #{tpu_custom_call.1} parent=5 // pred_check
        %p314 = pneg %p313
      $region46: #{tpu_custom_call.1} parent=5 // pred_check_branch
        %316 = sbr.rel (%p314) target = $region48
      $region47: #{tpu_custom_call.1} parent=5 // pred_region
        // Predicated region
        $region49: #{tpu_custom_call.1} parent=47 // pred_check
          %p317 = pneg %p44
        $region50: #{tpu_custom_call.1} parent=47 // pred_check_branch
          %319 = sbr.rel (%p317) target = $region52
        $region51: #{tpu_custom_call.1} parent=47 // pred_region
          %s320 = sand.u32 %s34, 1
          %s321 = scalar_lea.sflag [#allocation4], %s320
          %s322 = sand.u32 %s34, 1
          %s323 = smul.addr %s322, 256
          %s324 = scalar_lea.vmem [#allocation3], %s323
          %s325 = smul.u32 32, %s24
          %s327 = ssub.s32 4096, 4096
          %328 = vsyncadd %s321, %s327
          %s329 = smul.addr %s325, 2
          %s330 = smul.addr %s329, 64
          %s331 = scalar_lea.hbm %s0, %s330
          %s332 = sshll.u32 %s324, 4
          %s333 = int_to_ptr.vmem [resolvable:$true] %s332
          %338 = dma.hbm_to_vmem [thread:$0]  %s331, 4096, %s333, %s321, 128, 128, 8
        $region52: #{tpu_custom_call.1} parent=47 // pred_fallthru
          _
      $region48: #{tpu_custom_call.1} parent=5 // pred_fallthru
        _
      %p339 = scmp.le.s32.totalorder 1, %s24
      %p340 = scmp.lt.s32.totalorder %s24, 5
      %p341 = pnand %p339, %p340
      %p342 = pneg %p341
      // Predicated region
      $region53: #{tpu_custom_call.1} parent=5 // pred_check
        _
      $region54: #{tpu_custom_call.1} parent=5 // pred_check_branch
        %344 = sbr.rel (%p341) target = $region56
      $region55: #{tpu_custom_call.1} parent=5 // pred_region
        %s345 = ssub.s32 %s24, 1
        %s346 = sand.u32 %s37, 1
        %s347 = scalar_lea.sflag [#allocation4], %s346
        %s348 = sand.u32 %s37, 1
        %s349 = smul.addr %s348, 256
        %s350 = scalar_lea.vmem [#allocation3], %s349
        // Predicated region
        $region57: #{tpu_custom_call.1} parent=55 // pred_check
          %p351 = pneg %p50
        $region58: #{tpu_custom_call.1} parent=55 // pred_check_branch
          %353 = sbr.rel (%p351) target = $region60
        $region59: #{tpu_custom_call.1} parent=55 // pred_region
          %354 = dma.done %s347, 4096
        $region60: #{tpu_custom_call.1} parent=55 // pred_fallthru
          _
        // Predicated region
        $region61: #{tpu_custom_call.1} parent=55 // pred_check
          %p355 = pneg %p71
        $region62: #{tpu_custom_call.1} parent=55 // pred_check_branch
          %357 = sbr.rel (%p355) target = $region64
        $region63: #{tpu_custom_call.1} parent=55 // pred_region
          %358 = dma.done [#allocation7], 4096
        $region64: #{tpu_custom_call.1} parent=55 // pred_fallthru
          _
        // Predicated region
        $region65: #{tpu_custom_call.1} parent=55 // pred_check
          %p359 = pneg %p113
        $region66: #{tpu_custom_call.1} parent=55 // pred_check_branch
          %361 = sbr.rel (%p359) target = $region68
        $region67: #{tpu_custom_call.1} parent=55 // pred_region
          %362 = dma.done [#allocation7], 4096
        $region68: #{tpu_custom_call.1} parent=55 // pred_fallthru
          _
        // Predicated region
        $region69: #{tpu_custom_call.1} parent=55 // pred_check
          %p363 = pneg %p155
        $region70: #{tpu_custom_call.1} parent=55 // pred_check_branch
          %365 = sbr.rel (%p363) target = $region72
        $region71: #{tpu_custom_call.1} parent=55 // pred_region
          %366 = dma.done [#allocation10], 4096
        $region72: #{tpu_custom_call.1} parent=55 // pred_fallthru
          _
        %s367 = sand.u32 %s37, 1
        %s368 = scalar_lea.sflag [#allocation4], %s367
        %s369 = sand.u32 %s37, 1
        %s370 = smul.addr %s369, 256
        %s371 = scalar_lea.vmem [#allocation3], %s370
        %p372 = pneg %p50
        %p373 = pneg %p47
        %p374 = pneg %p71
        %p375 = pneg %p68
        %p376 = pneg %p92
        %p377 = pneg %p89
        %p378 = pneg %p113
        %p379 = pneg %p110
        %p380 = pneg %p134
        %p381 = pneg %p131
        %p382 = pneg %p155
        %p383 = pneg %p152
        %p384 = pneg %p176
        %p385 = pneg %p173
        %p386 = pneg %p197
        %p387 = pneg %p194
        %p388 = pneg %p218
        %p389 = pneg %p215
        %p390 = pneg %p244
        %p391 = pneg %p241
        %s392 = sand.u32 %s231, 1
        %s393 = scalar_lea.sflag [#allocation5], %s392
        %s394 = sand.u32 %s231, 1
        %s395 = smul.addr %s394, 2
        %s396 = scalar_lea.vmem [#allocation11], %s395
        %s397 = smul.u32 32, %s29
        %s398 = smul.u32 2, %s29
        %v399 = vld [vmem:[%s350] sm:$0xff]
        %v400 = vld [vmem:[%s350 + $0x8] sm:$0xff]
        %v401 = vld [vmem:[%s350 + $0x10] sm:$0xff]
        %v402 = vld [vmem:[%s350 + $0x18] sm:$0xff]
        %v403 = vld [vmem:[%s350 + $0x20] sm:$0xff]
        %v404 = vld [vmem:[%s350 + $0x28] sm:$0xff]
        %v405 = vld [vmem:[%s350 + $0x30] sm:$0xff]
        %v406 = vld [vmem:[%s350 + $0x38] sm:$0xff]
        %v407 = vld [vmem:[%s350 + $0x40] sm:$0xff]
        %v408 = vld [vmem:[%s350 + $0x48] sm:$0xff]
        %v409 = vld [vmem:[%s350 + $0x50] sm:$0xff]
        %v410 = vld [vmem:[%s350 + $0x58] sm:$0xff]
        %v411 = vld [vmem:[%s350 + $0x60] sm:$0xff]
        %v412 = vld [vmem:[%s350 + $0x68] sm:$0xff]
        %v413 = vld [vmem:[%s350 + $0x70] sm:$0xff]
        %v414 = vld [vmem:[%s350 + $0x78] sm:$0xff]
        %v415 = vld [vmem:[%s350 + $0x80] sm:$0xff]
        %v416 = vld [vmem:[%s350 + $0x88] sm:$0xff]
        %v417 = vld [vmem:[%s350 + $0x90] sm:$0xff]
        %v418 = vld [vmem:[%s350 + $0x98] sm:$0xff]
        %v419 = vld [vmem:[%s350 + $0xa0] sm:$0xff]
        %v420 = vld [vmem:[%s350 + $0xa8] sm:$0xff]
        %v421 = vld [vmem:[%s350 + $0xb0] sm:$0xff]
        %v422 = vld [vmem:[%s350 + $0xb8] sm:$0xff]
        %v423 = vld [vmem:[%s350 + $0xc0] sm:$0xff]
        %v424 = vld [vmem:[%s350 + $0xc8] sm:$0xff]
        %v425 = vld [vmem:[%s350 + $0xd0] sm:$0xff]
        %v426 = vld [vmem:[%s350 + $0xd8] sm:$0xff]
        %v427 = vld [vmem:[%s350 + $0xe0] sm:$0xff]
        %v428 = vld [vmem:[%s350 + $0xe8] sm:$0xff]
        %v429 = vld [vmem:[%s350 + $0xf0] sm:$0xff]
        %v430 = vld [vmem:[%s350 + $0xf8] sm:$0xff]
        %v431 = vld [vmem:[#allocation6] sm:$0xff]
        %v432 = vld [vmem:[#allocation6 + $0x8] sm:$0xff]
        %v433 = vld [vmem:[#allocation6 + $0x10] sm:$0xff]
        %v434 = vld [vmem:[#allocation6 + $0x18] sm:$0xff]
        %v435 = vld [vmem:[#allocation6 + $0x20] sm:$0xff]
        %v436 = vld [vmem:[#allocation6 + $0x28] sm:$0xff]
        %v437 = vld [vmem:[#allocation6 + $0x30] sm:$0xff]
        %v438 = vld [vmem:[#allocation6 + $0x38] sm:$0xff]
        %v439 = vld [vmem:[#allocation6 + $0x40] sm:$0xff]
        %v440 = vld [vmem:[#allocation6 + $0x48] sm:$0xff]
        %v441 = vld [vmem:[#allocation6 + $0x50] sm:$0xff]
        %v442 = vld [vmem:[#allocation6 + $0x58] sm:$0xff]
        %v443 = vld [vmem:[#allocation6 + $0x60] sm:$0xff]
        %v444 = vld [vmem:[#allocation6 + $0x68] sm:$0xff]
        %v445 = vld [vmem:[#allocation6 + $0x70] sm:$0xff]
        %v446 = vld [vmem:[#allocation6 + $0x78] sm:$0xff]
        %v447 = vld [vmem:[#allocation6 + $0x80] sm:$0xff]
        %v448 = vld [vmem:[#allocation6 + $0x88] sm:$0xff]
        %v449 = vld [vmem:[#allocation6 + $0x90] sm:$0xff]
        %v450 = vld [vmem:[#allocation6 + $0x98] sm:$0xff]
        %v451 = vld [vmem:[#allocation6 + $0xa0] sm:$0xff]
        %v452 = vld [vmem:[#allocation6 + $0xa8] sm:$0xff]
        %v453 = vld [vmem:[#allocation6 + $0xb0] sm:$0xff]
        %v454 = vld [vmem:[#allocation6 + $0xb8] sm:$0xff]
        %v455 = vld [vmem:[#allocation6 + $0xc0] sm:$0xff]
        %v456 = vld [vmem:[#allocation6 + $0xc8] sm:$0xff]
        %v457 = vld [vmem:[#allocation6 + $0xd0] sm:$0xff]
        %v458 = vld [vmem:[#allocation6 + $0xd8] sm:$0xff]
        %v459 = vld [vmem:[#allocation6 + $0xe0] sm:$0xff]
        %v460 = vld [vmem:[#allocation6 + $0xe8] sm:$0xff]
        %v461 = vld [vmem:[#allocation6 + $0xf0] sm:$0xff]
        %v462 = vld [vmem:[#allocation6 + $0xf8] sm:$0xff]
        %v463 = vld [vmem:[%s2] sm:$0x3]
        %v465 = vlaneseq
        %v466 = vshrl.u32 %v465, 7
        %v467 = vsub.s32 0, %v466
        %v468 = vrot.slane %v463, %v467
        %v469 = vlaneseq
        %v470 = vshrl.u32 %v469, 7
        %v471 = vsub.s32 1, %v470
        %v472 = vrot.slane %v463, %v471
        %v507 = vunpack.c.l.b16 %v399
        %v508 = vunpack.c.h.b16 %v399
        %v509 = vunpack.c.l.b16 %v400
        %v510 = vunpack.c.h.b16 %v400
        %v511 = vunpack.c.l.b16 %v401
        %v512 = vunpack.c.h.b16 %v401
        %v513 = vunpack.c.l.b16 %v402
        %v514 = vunpack.c.h.b16 %v402
        %v515 = vunpack.c.l.b16 %v403
        %v516 = vunpack.c.h.b16 %v403
        %v517 = vunpack.c.l.b16 %v404
        %v518 = vunpack.c.h.b16 %v404
        %v519 = vunpack.c.l.b16 %v405
        %v520 = vunpack.c.h.b16 %v405
        %v521 = vunpack.c.l.b16 %v406
        %v522 = vunpack.c.h.b16 %v406
        %v523 = vunpack.c.l.b16 %v407
        %v524 = vunpack.c.h.b16 %v407
        %v525 = vunpack.c.l.b16 %v408
        %v526 = vunpack.c.h.b16 %v408
        %v527 = vunpack.c.l.b16 %v409
        %v528 = vunpack.c.h.b16 %v409
        %v529 = vunpack.c.l.b16 %v410
        %v530 = vunpack.c.h.b16 %v410
        %v531 = vunpack.c.l.b16 %v411
        %v532 = vunpack.c.h.b16 %v411
        %v533 = vunpack.c.l.b16 %v412
        %v534 = vunpack.c.h.b16 %v412
        %v535 = vunpack.c.l.b16 %v413
        %v536 = vunpack.c.h.b16 %v413
        %v537 = vunpack.c.l.b16 %v414
        %v538 = vunpack.c.h.b16 %v414
        %v539 = vunpack.c.l.b16 %v415
        %v540 = vunpack.c.h.b16 %v415
        %v541 = vunpack.c.l.b16 %v416
        %v542 = vunpack.c.h.b16 %v416
        %v543 = vunpack.c.l.b16 %v417
        %v544 = vunpack.c.h.b16 %v417
        %v545 = vunpack.c.l.b16 %v418
        %v546 = vunpack.c.h.b16 %v418
        %v547 = vunpack.c.l.b16 %v419
        %v548 = vunpack.c.h.b16 %v419
        %v549 = vunpack.c.l.b16 %v420
        %v550 = vunpack.c.h.b16 %v420
        %v551 = vunpack.c.l.b16 %v421
        %v552 = vunpack.c.h.b16 %v421
        %v553 = vunpack.c.l.b16 %v422
        %v554 = vunpack.c.h.b16 %v422
        %v555 = vunpack.c.l.b16 %v423
        %v556 = vunpack.c.h.b16 %v423
        %v557 = vunpack.c.l.b16 %v424
        %v558 = vunpack.c.h.b16 %v424
        %v559 = vunpack.c.l.b16 %v425
        %v560 = vunpack.c.h.b16 %v425
        %v561 = vunpack.c.l.b16 %v426
        %v562 = vunpack.c.h.b16 %v426
        %v563 = vunpack.c.l.b16 %v427
        %v564 = vunpack.c.h.b16 %v427
        %v565 = vunpack.c.l.b16 %v428
        %v566 = vunpack.c.h.b16 %v428
        %v567 = vunpack.c.l.b16 %v429
        %v568 = vunpack.c.h.b16 %v429
        %v569 = vunpack.c.l.b16 %v430
        %v570 = vunpack.c.h.b16 %v430
        %v571 = vpack.c.b16 %v509, %v507
        %v572 = vpack.c.b16 %v510, %v508
        %v573 = vpack.c.b16 %v513, %v511
        %v574 = vpack.c.b16 %v514, %v512
        %v575 = vpack.c.b16 %v517, %v515
        %v576 = vpack.c.b16 %v518, %v516
        %v577 = vpack.c.b16 %v521, %v519
        %v578 = vpack.c.b16 %v522, %v520
        %v579 = vpack.c.b16 %v525, %v523
        %v580 = vpack.c.b16 %v526, %v524
        %v581 = vpack.c.b16 %v529, %v527
        %v582 = vpack.c.b16 %v530, %v528
        %v583 = vpack.c.b16 %v533, %v531
        %v584 = vpack.c.b16 %v534, %v532
        %v585 = vpack.c.b16 %v537, %v535
        %v586 = vpack.c.b16 %v538, %v536
        %v587 = vpack.c.b16 %v541, %v539
        %v588 = vpack.c.b16 %v542, %v540
        %v589 = vpack.c.b16 %v545, %v543
        %v590 = vpack.c.b16 %v546, %v544
        %v591 = vpack.c.b16 %v549, %v547
        %v592 = vpack.c.b16 %v550, %v548
        %v593 = vpack.c.b16 %v553, %v551
        %v594 = vpack.c.b16 %v554, %v552
        %v595 = vpack.c.b16 %v557, %v555
        %v596 = vpack.c.b16 %v558, %v556
        %v597 = vpack.c.b16 %v561, %v559
        %v598 = vpack.c.b16 %v562, %v560
        %v599 = vpack.c.b16 %v565, %v563
        %v600 = vpack.c.b16 %v566, %v564
        %v601 = vpack.c.b16 %v569, %v567
        %v602 = vpack.c.b16 %v570, %v568
        %v667 = vunpack.c.l.b16 %v431
        %v668 = vunpack.c.h.b16 %v431
        %v669 = vunpack.c.l.b16 %v432
        %v670 = vunpack.c.h.b16 %v432
        %v671 = vunpack.c.l.b16 %v433
        %v672 = vunpack.c.h.b16 %v433
        %v673 = vunpack.c.l.b16 %v434
        %v674 = vunpack.c.h.b16 %v434
        %v675 = vunpack.c.l.b16 %v435
        %v676 = vunpack.c.h.b16 %v435
        %v677 = vunpack.c.l.b16 %v436
        %v678 = vunpack.c.h.b16 %v436
        %v679 = vunpack.c.l.b16 %v437
        %v680 = vunpack.c.h.b16 %v437
        %v681 = vunpack.c.l.b16 %v438
        %v682 = vunpack.c.h.b16 %v438
        %v683 = vunpack.c.l.b16 %v439
        %v684 = vunpack.c.h.b16 %v439
        %v685 = vunpack.c.l.b16 %v440
        %v686 = vunpack.c.h.b16 %v440
        %v687 = vunpack.c.l.b16 %v441
        %v688 = vunpack.c.h.b16 %v441
        %v689 = vunpack.c.l.b16 %v442
        %v690 = vunpack.c.h.b16 %v442
        %v691 = vunpack.c.l.b16 %v443
        %v692 = vunpack.c.h.b16 %v443
        %v693 = vunpack.c.l.b16 %v444
        %v694 = vunpack.c.h.b16 %v444
        %v695 = vunpack.c.l.b16 %v445
        %v696 = vunpack.c.h.b16 %v445
        %v697 = vunpack.c.l.b16 %v446
        %v698 = vunpack.c.h.b16 %v446
        %v699 = vunpack.c.l.b16 %v447
        %v700 = vunpack.c.h.b16 %v447
        %v701 = vunpack.c.l.b16 %v448
        %v702 = vunpack.c.h.b16 %v448
        %v703 = vunpack.c.l.b16 %v449
        %v704 = vunpack.c.h.b16 %v449
        %v705 = vunpack.c.l.b16 %v450
        %v706 = vunpack.c.h.b16 %v450
        %v707 = vunpack.c.l.b16 %v451
        %v708 = vunpack.c.h.b16 %v451
        %v709 = vunpack.c.l.b16 %v452
        %v710 = vunpack.c.h.b16 %v452
        %v711 = vunpack.c.l.b16 %v453
        %v712 = vunpack.c.h.b16 %v453
        %v713 = vunpack.c.l.b16 %v454
        %v714 = vunpack.c.h.b16 %v454
        %v715 = vunpack.c.l.b16 %v455
        %v716 = vunpack.c.h.b16 %v455
        %v717 = vunpack.c.l.b16 %v456
        %v718 = vunpack.c.h.b16 %v456
        %v719 = vunpack.c.l.b16 %v457
        %v720 = vunpack.c.h.b16 %v457
        %v721 = vunpack.c.l.b16 %v458
        %v722 = vunpack.c.h.b16 %v458
        %v723 = vunpack.c.l.b16 %v459
        %v724 = vunpack.c.h.b16 %v459
        %v725 = vunpack.c.l.b16 %v460
        %v726 = vunpack.c.h.b16 %v460
        %v727 = vunpack.c.l.b16 %v461
        %v728 = vunpack.c.h.b16 %v461
        %v729 = vunpack.c.l.b16 %v462
        %v730 = vunpack.c.h.b16 %v462
        %v731 = vpack.c.b16 %v669, %v667
        %v732 = vpack.c.b16 %v670, %v668
        %v733 = vpack.c.b16 %v673, %v671
        %v734 = vpack.c.b16 %v674, %v672
        %v735 = vpack.c.b16 %v677, %v675
        %v736 = vpack.c.b16 %v678, %v676
        %v737 = vpack.c.b16 %v681, %v679
        %v738 = vpack.c.b16 %v682, %v680
        %v739 = vpack.c.b16 %v685, %v683
        %v740 = vpack.c.b16 %v686, %v684
        %v741 = vpack.c.b16 %v689, %v687
        %v742 = vpack.c.b16 %v690, %v688
        %v743 = vpack.c.b16 %v693, %v691
        %v744 = vpack.c.b16 %v694, %v692
        %v745 = vpack.c.b16 %v697, %v695
        %v746 = vpack.c.b16 %v698, %v696
        %v747 = vpack.c.b16 %v701, %v699
        %v748 = vpack.c.b16 %v702, %v700
        %v749 = vpack.c.b16 %v705, %v703
        %v750 = vpack.c.b16 %v706, %v704
        %v751 = vpack.c.b16 %v709, %v707
        %v752 = vpack.c.b16 %v710, %v708
        %v753 = vpack.c.b16 %v713, %v711
        %v754 = vpack.c.b16 %v714, %v712
        %v755 = vpack.c.b16 %v717, %v715
        %v756 = vpack.c.b16 %v718, %v716
        %v757 = vpack.c.b16 %v721, %v719
        %v758 = vpack.c.b16 %v722, %v720
        %v759 = vpack.c.b16 %v725, %v723
        %v760 = vpack.c.b16 %v726, %v724
        %v761 = vpack.c.b16 %v729, %v727
        %v762 = vpack.c.b16 %v730, %v728
        %795 = vmatprep.subr.bf16.mxu0 %v746
        %796 = vmatpush1.bf16.msra.mxu0 %v745
        %797 = vmatprep.subr.bf16.mxu0 %v744
        %798 = vmatpush1.bf16.msra.mxu0 %v743
        %799 = vmatprep.subr.bf16.mxu0 %v742
        %800 = vmatpush1.bf16.msra.mxu0 %v741
        %801 = vmatprep.subr.bf16.mxu0 %v740
        %802 = vmatpush1.bf16.msra.mxu0 %v739
        %803 = vmatprep.subr.bf16.mxu0 %v738
        %804 = vmatpush1.bf16.msra.mxu0 %v737
        %805 = vmatprep.subr.bf16.mxu0 %v736
        %806 = vmatpush1.bf16.msra.mxu0 %v735
        %807 = vmatprep.subr.bf16.mxu0 %v734
        %808 = vmatpush1.bf16.msra.mxu0 %v733
        %809 = vmatprep.subr.bf16.mxu0 %v732
        %810 = vmatpush1.bf16.msra.mxu0 %v731
        %811 = vmatprep.subr.bf16.mxu0 %v762
        %812 = vmatpush2.bf16.msra.mxu0 %v761
        %813 = vmatprep.subr.bf16.mxu0 %v760
        %814 = vmatpush2.bf16.msra.mxu0 %v759
        %815 = vmatprep.subr.bf16.mxu0 %v758
        %816 = vmatpush2.bf16.msra.mxu0 %v757
        %817 = vmatprep.subr.bf16.mxu0 %v756
        %818 = vmatpush2.bf16.msra.mxu0 %v755
        %819 = vmatprep.subr.bf16.mxu0 %v754
        %820 = vmatpush2.bf16.msra.mxu0 %v753
        %821 = vmatprep.subr.bf16.mxu0 %v752
        %822 = vmatpush2.bf16.msra.mxu0 %v751
        %823 = vmatprep.subr.bf16.mxu0 %v750
        %824 = vmatpush2.bf16.msra.mxu0 %v749
        %825 = vmatprep.subr.bf16.mxu0 %v748
        %826 = vmatpush2.bf16.msra.mxu0 %v747
        %827 = vmatprep.mubr.bf16.mxu0 %v572
        %828 = vmatmul.mubr.bf16.gmra.mxu0 %v571
        %v829 = vpop.f32.mrf.mxu0
        %v830 = vadd.f32 %v468, %v829
        %v831 = vpop.f32.mrf.mxu0
        %v832 = vadd.f32 %v472, %v831
        %v833 = vpop.f32.mrf.mxu0
        %v834 = vadd.f32 %v468, %v833
        %v835 = vpop.f32.mrf.mxu0
        %v836 = vadd.f32 %v472, %v835
        %837 = vmatprep.mubr.bf16.mxu0 %v574
        %838 = vmatmul.mubr.bf16.gmra.mxu0 %v573
        %v839 = vpop.f32.mrf.mxu0
        %v840 = vadd.f32 %v468, %v839
        %v841 = vpop.f32.mrf.mxu0
        %v842 = vadd.f32 %v472, %v841
        %v843 = vpop.f32.mrf.mxu0
        %v844 = vadd.f32 %v468, %v843
        %v845 = vpop.f32.mrf.mxu0
        %v846 = vadd.f32 %v472, %v845
        %847 = vmatprep.mubr.bf16.mxu0 %v576
        %848 = vmatmul.mubr.bf16.gmra.mxu0 %v575
        %v849 = vpop.f32.mrf.mxu0
        %v850 = vadd.f32 %v468, %v849
        %v851 = vpop.f32.mrf.mxu0
        %v852 = vadd.f32 %v472, %v851
        %v853 = vpop.f32.mrf.mxu0
        %v854 = vadd.f32 %v468, %v853
        %v855 = vpop.f32.mrf.mxu0
        %v856 = vadd.f32 %v472, %v855
        %857 = vmatprep.mubr.bf16.mxu0 %v578
        %858 = vmatmul.mubr.bf16.gmra.mxu0 %v577
        %v859 = vpop.f32.mrf.mxu0
        %v860 = vadd.f32 %v468, %v859
        %v861 = vpop.f32.mrf.mxu0
        %v862 = vadd.f32 %v472, %v861
        %v863 = vpop.f32.mrf.mxu0
        %v864 = vadd.f32 %v468, %v863
        %v865 = vpop.f32.mrf.mxu0
        %v866 = vadd.f32 %v472, %v865
        %867 = vmatprep.mubr.bf16.mxu0 %v580
        %868 = vmatmul.mubr.bf16.gmra.mxu0 %v579
        %v869 = vpop.f32.mrf.mxu0
        %v870 = vadd.f32 %v468, %v869
        %v871 = vpop.f32.mrf.mxu0
        %v872 = vadd.f32 %v472, %v871
        %v873 = vpop.f32.mrf.mxu0
        %v874 = vadd.f32 %v468, %v873
        %v875 = vpop.f32.mrf.mxu0
        %v876 = vadd.f32 %v472, %v875
        %877 = vmatprep.mubr.bf16.mxu0 %v582
        %878 = vmatmul.mubr.bf16.gmra.mxu0 %v581
        %v879 = vpop.f32.mrf.mxu0
        %v880 = vadd.f32 %v468, %v879
        %v881 = vpop.f32.mrf.mxu0
        %v882 = vadd.f32 %v472, %v881
        %v883 = vpop.f32.mrf.mxu0
        %v884 = vadd.f32 %v468, %v883
        %v885 = vpop.f32.mrf.mxu0
        %v886 = vadd.f32 %v472, %v885
        %887 = vmatprep.mubr.bf16.mxu0 %v584
        %888 = vmatmul.mubr.bf16.gmra.mxu0 %v583
        %v889 = vpop.f32.mrf.mxu0
        %v890 = vadd.f32 %v468, %v889
        %v891 = vpop.f32.mrf.mxu0
        %v892 = vadd.f32 %v472, %v891
        %v893 = vpop.f32.mrf.mxu0
        %v894 = vadd.f32 %v468, %v893
        %v895 = vpop.f32.mrf.mxu0
        %v896 = vadd.f32 %v472, %v895
        %897 = vmatprep.mubr.bf16.mxu0 %v586
        %898 = vmatmul.mubr.bf16.gmra.mxu0 %v585
        %v899 = vpop.f32.mrf.mxu0
        %v900 = vadd.f32 %v468, %v899
        %v901 = vpop.f32.mrf.mxu0
        %v902 = vadd.f32 %v472, %v901
        %v903 = vpop.f32.mrf.mxu0
        %v904 = vadd.f32 %v468, %v903
        %v905 = vpop.f32.mrf.mxu0
        %v906 = vadd.f32 %v472, %v905
        %907 = vmatprep.mubr.bf16.mxu0 %v588
        %908 = vmatmul.mubr.bf16.gmra.mxu0 %v587
        %v909 = vpop.f32.mrf.mxu0
        %v910 = vadd.f32 %v468, %v909
        %v911 = vpop.f32.mrf.mxu0
        %v912 = vadd.f32 %v472, %v911
        %v913 = vpop.f32.mrf.mxu0
        %v914 = vadd.f32 %v468, %v913
        %v915 = vpop.f32.mrf.mxu0
        %v916 = vadd.f32 %v472, %v915
        %917 = vmatprep.mubr.bf16.mxu0 %v590
        %918 = vmatmul.mubr.bf16.gmra.mxu0 %v589
        %v919 = vpop.f32.mrf.mxu0
        %v920 = vadd.f32 %v468, %v919
        %v921 = vpop.f32.mrf.mxu0
        %v922 = vadd.f32 %v472, %v921
        %v923 = vpop.f32.mrf.mxu0
        %v924 = vadd.f32 %v468, %v923
        %v925 = vpop.f32.mrf.mxu0
        %v926 = vadd.f32 %v472, %v925
        %927 = vmatprep.mubr.bf16.mxu0 %v592
        %928 = vmatmul.mubr.bf16.gmra.mxu0 %v591
        %v929 = vpop.f32.mrf.mxu0
        %v930 = vadd.f32 %v468, %v929
        %v931 = vpop.f32.mrf.mxu0
        %v932 = vadd.f32 %v472, %v931
        %v933 = vpop.f32.mrf.mxu0
        %v934 = vadd.f32 %v468, %v933
        %v935 = vpop.f32.mrf.mxu0
        %v936 = vadd.f32 %v472, %v935
        %937 = vmatprep.mubr.bf16.mxu0 %v594
        %938 = vmatmul.mubr.bf16.gmra.mxu0 %v593
        %v939 = vpop.f32.mrf.mxu0
        %v940 = vadd.f32 %v468, %v939
        %v941 = vpop.f32.mrf.mxu0
        %v942 = vadd.f32 %v472, %v941
        %v943 = vpop.f32.mrf.mxu0
        %v944 = vadd.f32 %v468, %v943
        %v945 = vpop.f32.mrf.mxu0
        %v946 = vadd.f32 %v472, %v945
        %947 = vmatprep.mubr.bf16.mxu0 %v596
        %948 = vmatmul.mubr.bf16.gmra.mxu0 %v595
        %v949 = vpop.f32.mrf.mxu0
        %v950 = vadd.f32 %v468, %v949
        %v951 = vpop.f32.mrf.mxu0
        %v952 = vadd.f32 %v472, %v951
        %v953 = vpop.f32.mrf.mxu0
        %v954 = vadd.f32 %v468, %v953
        %v955 = vpop.f32.mrf.mxu0
        %v956 = vadd.f32 %v472, %v955
        %957 = vmatprep.mubr.bf16.mxu0 %v598
        %958 = vmatmul.mubr.bf16.gmra.mxu0 %v597
        %v959 = vpop.f32.mrf.mxu0
        %v960 = vadd.f32 %v468, %v959
        %v961 = vpop.f32.mrf.mxu0
        %v962 = vadd.f32 %v472, %v961
        %v963 = vpop.f32.mrf.mxu0
        %v964 = vadd.f32 %v468, %v963
        %v965 = vpop.f32.mrf.mxu0
        %v966 = vadd.f32 %v472, %v965
        %967 = vmatprep.mubr.bf16.mxu0 %v600
        %968 = vmatmul.mubr.bf16.gmra.mxu0 %v599
        %v969 = vpop.f32.mrf.mxu0
        %v970 = vadd.f32 %v468, %v969
        %v971 = vpop.f32.mrf.mxu0
        %v972 = vadd.f32 %v472, %v971
        %v973 = vpop.f32.mrf.mxu0
        %v974 = vadd.f32 %v468, %v973
        %v975 = vpop.f32.mrf.mxu0
        %v976 = vadd.f32 %v472, %v975
        %977 = vmatprep.mubr.bf16.mxu0 %v602
        %978 = vmatmul.mubr.bf16.gmra.mxu0 %v601
        %v979 = vpop.f32.mrf.mxu0
        %v980 = vadd.f32 %v468, %v979
        %v981 = vpop.f32.mrf.mxu0
        %v982 = vadd.f32 %v472, %v981
        %v983 = vpop.f32.mrf.mxu0
        %v984 = vadd.f32 %v468, %v983
        %v985 = vpop.f32.mrf.mxu0
        %v986 = vadd.f32 %v472, %v985
        %987 = vdwg.mxu0
        %vm988 = vcmp.gt.f32.partialorder %v830, 0.0
        %vm989 = vcmp.gt.f32.partialorder %v832, 0.0
        %vm990 = vcmp.gt.f32.partialorder %v834, 0.0
        %vm991 = vcmp.gt.f32.partialorder %v836, 0.0
        %vm992 = vcmp.gt.f32.partialorder %v840, 0.0
        %vm993 = vcmp.gt.f32.partialorder %v842, 0.0
        %vm994 = vcmp.gt.f32.partialorder %v844, 0.0
        %vm995 = vcmp.gt.f32.partialorder %v846, 0.0
        %vm996 = vcmp.gt.f32.partialorder %v850, 0.0
        %vm997 = vcmp.gt.f32.partialorder %v852, 0.0
        %vm998 = vcmp.gt.f32.partialorder %v854, 0.0
        %vm999 = vcmp.gt.f32.partialorder %v856, 0.0
        %vm1000 = vcmp.gt.f32.partialorder %v860, 0.0
        %vm1001 = vcmp.gt.f32.partialorder %v862, 0.0
        %vm1002 = vcmp.gt.f32.partialorder %v864, 0.0
        %vm1003 = vcmp.gt.f32.partialorder %v866, 0.0
        %vm1004 = vcmp.gt.f32.partialorder %v870, 0.0
        %vm1005 = vcmp.gt.f32.partialorder %v872, 0.0
        %vm1006 = vcmp.gt.f32.partialorder %v874, 0.0
        %vm1007 = vcmp.gt.f32.partialorder %v876, 0.0
        %vm1008 = vcmp.gt.f32.partialorder %v880, 0.0
        %vm1009 = vcmp.gt.f32.partialorder %v882, 0.0
        %vm1010 = vcmp.gt.f32.partialorder %v884, 0.0
        %vm1011 = vcmp.gt.f32.partialorder %v886, 0.0
        %vm1012 = vcmp.gt.f32.partialorder %v890, 0.0
        %vm1013 = vcmp.gt.f32.partialorder %v892, 0.0
        %vm1014 = vcmp.gt.f32.partialorder %v894, 0.0
        %vm1015 = vcmp.gt.f32.partialorder %v896, 0.0
        %vm1016 = vcmp.gt.f32.partialorder %v900, 0.0
        %vm1017 = vcmp.gt.f32.partialorder %v902, 0.0
        %vm1018 = vcmp.gt.f32.partialorder %v904, 0.0
        %vm1019 = vcmp.gt.f32.partialorder %v906, 0.0
        %vm1020 = vcmp.gt.f32.partialorder %v910, 0.0
        %vm1021 = vcmp.gt.f32.partialorder %v912, 0.0
        %vm1022 = vcmp.gt.f32.partialorder %v914, 0.0
        %vm1023 = vcmp.gt.f32.partialorder %v916, 0.0
        %vm1024 = vcmp.gt.f32.partialorder %v920, 0.0
        %vm1025 = vcmp.gt.f32.partialorder %v922, 0.0
        %vm1026 = vcmp.gt.f32.partialorder %v924, 0.0
        %vm1027 = vcmp.gt.f32.partialorder %v926, 0.0
        %vm1028 = vcmp.gt.f32.partialorder %v930, 0.0
        %vm1029 = vcmp.gt.f32.partialorder %v932, 0.0
        %vm1030 = vcmp.gt.f32.partialorder %v934, 0.0
        %vm1031 = vcmp.gt.f32.partialorder %v936, 0.0
        %vm1032 = vcmp.gt.f32.partialorder %v940, 0.0
        %vm1033 = vcmp.gt.f32.partialorder %v942, 0.0
        %vm1034 = vcmp.gt.f32.partialorder %v944, 0.0
        %vm1035 = vcmp.gt.f32.partialorder %v946, 0.0
        %vm1036 = vcmp.gt.f32.partialorder %v950, 0.0
        %vm1037 = vcmp.gt.f32.partialorder %v952, 0.0
        %vm1038 = vcmp.gt.f32.partialorder %v954, 0.0
        %vm1039 = vcmp.gt.f32.partialorder %v956, 0.0
        %vm1040 = vcmp.gt.f32.partialorder %v960, 0.0
        %vm1041 = vcmp.gt.f32.partialorder %v962, 0.0
        %vm1042 = vcmp.gt.f32.partialorder %v964, 0.0
        %vm1043 = vcmp.gt.f32.partialorder %v966, 0.0
        %vm1044 = vcmp.gt.f32.partialorder %v970, 0.0
        %vm1045 = vcmp.gt.f32.partialorder %v972, 0.0
        %vm1046 = vcmp.gt.f32.partialorder %v974, 0.0
        %vm1047 = vcmp.gt.f32.partialorder %v976, 0.0
        %vm1048 = vcmp.gt.f32.partialorder %v980, 0.0
        %vm1049 = vcmp.gt.f32.partialorder %v982, 0.0
        %vm1050 = vcmp.gt.f32.partialorder %v984, 0.0
        %vm1051 = vcmp.gt.f32.partialorder %v986, 0.0
        %v1052 = vmul.f32 %v830, 1.442695
        %v1053 = vpow.pop %v1052
        %v1054 = vmul.f32 %v832, 1.442695
        %v1055 = vpow.pop %v1054
        %v1056 = vmul.f32 %v834, 1.442695
        %v1057 = vpow.pop %v1056
        %v1058 = vmul.f32 %v836, 1.442695
        %v1059 = vpow.pop %v1058
        %v1060 = vmul.f32 %v840, 1.442695
        %v1061 = vpow.pop %v1060
        %v1062 = vmul.f32 %v842, 1.442695
        %v1063 = vpow.pop %v1062
        %v1064 = vmul.f32 %v844, 1.442695
        %v1065 = vpow.pop %v1064
        %v1066 = vmul.f32 %v846, 1.442695
        %v1067 = vpow.pop %v1066
        %v1068 = vmul.f32 %v850, 1.442695
        %v1069 = vpow.pop %v1068
        %v1070 = vmul.f32 %v852, 1.442695
        %v1071 = vpow.pop %v1070
        %v1072 = vmul.f32 %v854, 1.442695
        %v1073 = vpow.pop %v1072
        %v1074 = vmul.f32 %v856, 1.442695
        %v1075 = vpow.pop %v1074
        %v1076 = vmul.f32 %v860, 1.442695
        %v1077 = vpow.pop %v1076
        %v1078 = vmul.f32 %v862, 1.442695
        %v1079 = vpow.pop %v1078
        %v1080 = vmul.f32 %v864, 1.442695
        %v1081 = vpow.pop %v1080
        %v1082 = vmul.f32 %v866, 1.442695
        %v1083 = vpow.pop %v1082
        %v1084 = vmul.f32 %v870, 1.442695
        %v1085 = vpow.pop %v1084
        %v1086 = vmul.f32 %v872, 1.442695
        %v1087 = vpow.pop %v1086
        %v1088 = vmul.f32 %v874, 1.442695
        %v1089 = vpow.pop %v1088
        %v1090 = vmul.f32 %v876, 1.442695
        %v1091 = vpow.pop %v1090
        %v1092 = vmul.f32 %v880, 1.442695
        %v1093 = vpow.pop %v1092
        %v1094 = vmul.f32 %v882, 1.442695
        %v1095 = vpow.pop %v1094
        %v1096 = vmul.f32 %v884, 1.442695
        %v1097 = vpow.pop %v1096
        %v1098 = vmul.f32 %v886, 1.442695
        %v1099 = vpow.pop %v1098
        %v1100 = vmul.f32 %v890, 1.442695
        %v1101 = vpow.pop %v1100
        %v1102 = vmul.f32 %v892, 1.442695
        %v1103 = vpow.pop %v1102
        %v1104 = vmul.f32 %v894, 1.442695
        %v1105 = vpow.pop %v1104
        %v1106 = vmul.f32 %v896, 1.442695
        %v1107 = vpow.pop %v1106
        %v1108 = vmul.f32 %v900, 1.442695
        %v1109 = vpow.pop %v1108
        %v1110 = vmul.f32 %v902, 1.442695
        %v1111 = vpow.pop %v1110
        %v1112 = vmul.f32 %v904, 1.442695
        %v1113 = vpow.pop %v1112
        %v1114 = vmul.f32 %v906, 1.442695
        %v1115 = vpow.pop %v1114
        %v1116 = vmul.f32 %v910, 1.442695
        %v1117 = vpow.pop %v1116
        %v1118 = vmul.f32 %v912, 1.442695
        %v1119 = vpow.pop %v1118
        %v1120 = vmul.f32 %v914, 1.442695
        %v1121 = vpow.pop %v1120
        %v1122 = vmul.f32 %v916, 1.442695
        %v1123 = vpow.pop %v1122
        %v1124 = vmul.f32 %v920, 1.442695
        %v1125 = vpow.pop %v1124
        %v1126 = vmul.f32 %v922, 1.442695
        %v1127 = vpow.pop %v1126
        %v1128 = vmul.f32 %v924, 1.442695
        %v1129 = vpow.pop %v1128
        %v1130 = vmul.f32 %v926, 1.442695
        %v1131 = vpow.pop %v1130
        %v1132 = vmul.f32 %v930, 1.442695
        %v1133 = vpow.pop %v1132
        %v1134 = vmul.f32 %v932, 1.442695
        %v1135 = vpow.pop %v1134
        %v1136 = vmul.f32 %v934, 1.442695
        %v1137 = vpow.pop %v1136
        %v1138 = vmul.f32 %v936, 1.442695
        %v1139 = vpow.pop %v1138
        %v1140 = vmul.f32 %v940, 1.442695
        %v1141 = vpow.pop %v1140
        %v1142 = vmul.f32 %v942, 1.442695
        %v1143 = vpow.pop %v1142
        %v1144 = vmul.f32 %v944, 1.442695
        %v1145 = vpow.pop %v1144
        %v1146 = vmul.f32 %v946, 1.442695
        %v1147 = vpow.pop %v1146
        %v1148 = vmul.f32 %v950, 1.442695
        %v1149 = vpow.pop %v1148
        %v1150 = vmul.f32 %v952, 1.442695
        %v1151 = vpow.pop %v1150
        %v1152 = vmul.f32 %v954, 1.442695
        %v1153 = vpow.pop %v1152
        %v1154 = vmul.f32 %v956, 1.442695
        %v1155 = vpow.pop %v1154
        %v1156 = vmul.f32 %v960, 1.442695
        %v1157 = vpow.pop %v1156
        %v1158 = vmul.f32 %v962, 1.442695
        %v1159 = vpow.pop %v1158
        %v1160 = vmul.f32 %v964, 1.442695
        %v1161 = vpow.pop %v1160
        %v1162 = vmul.f32 %v966, 1.442695
        %v1163 = vpow.pop %v1162
        %v1164 = vmul.f32 %v970, 1.442695
        %v1165 = vpow.pop %v1164
        %v1166 = vmul.f32 %v972, 1.442695
        %v1167 = vpow.pop %v1166
        %v1168 = vmul.f32 %v974, 1.442695
        %v1169 = vpow.pop %v1168
        %v1170 = vmul.f32 %v976, 1.442695
        %v1171 = vpow.pop %v1170
        %v1172 = vmul.f32 %v980, 1.442695
        %v1173 = vpow.pop %v1172
        %v1174 = vmul.f32 %v982, 1.442695
        %v1175 = vpow.pop %v1174
        %v1176 = vmul.f32 %v984, 1.442695
        %v1177 = vpow.pop %v1176
        %v1178 = vmul.f32 %v986, 1.442695
        %v1179 = vpow.pop %v1178
        %v1180 = vsub.f32 %v1053, 1.0
        %v1181 = vsub.f32 %v1055, 1.0
        %v1182 = vsub.f32 %v1057, 1.0
        %v1183 = vsub.f32 %v1059, 1.0
        %v1184 = vsub.f32 %v1061, 1.0
        %v1185 = vsub.f32 %v1063, 1.0
        %v1186 = vsub.f32 %v1065, 1.0
        %v1187 = vsub.f32 %v1067, 1.0
        %v1188 = vsub.f32 %v1069, 1.0
        %v1189 = vsub.f32 %v1071, 1.0
        %v1190 = vsub.f32 %v1073, 1.0
        %v1191 = vsub.f32 %v1075, 1.0
        %v1192 = vsub.f32 %v1077, 1.0
        %v1193 = vsub.f32 %v1079, 1.0
        %v1194 = vsub.f32 %v1081, 1.0
        %v1195 = vsub.f32 %v1083, 1.0
        %v1196 = vsub.f32 %v1085, 1.0
        %v1197 = vsub.f32 %v1087, 1.0
        %v1198 = vsub.f32 %v1089, 1.0
        %v1199 = vsub.f32 %v1091, 1.0
        %v1200 = vsub.f32 %v1093, 1.0
        %v1201 = vsub.f32 %v1095, 1.0
        %v1202 = vsub.f32 %v1097, 1.0
        %v1203 = vsub.f32 %v1099, 1.0
        %v1204 = vsub.f32 %v1101, 1.0
        %v1205 = vsub.f32 %v1103, 1.0
        %v1206 = vsub.f32 %v1105, 1.0
        %v1207 = vsub.f32 %v1107, 1.0
        %v1208 = vsub.f32 %v1109, 1.0
        %v1209 = vsub.f32 %v1111, 1.0
        %v1210 = vsub.f32 %v1113, 1.0
        %v1211 = vsub.f32 %v1115, 1.0
        %v1212 = vsub.f32 %v1117, 1.0
        %v1213 = vsub.f32 %v1119, 1.0
        %v1214 = vsub.f32 %v1121, 1.0
        %v1215 = vsub.f32 %v1123, 1.0
        %v1216 = vsub.f32 %v1125, 1.0
        %v1217 = vsub.f32 %v1127, 1.0
        %v1218 = vsub.f32 %v1129, 1.0
        %v1219 = vsub.f32 %v1131, 1.0
        %v1220 = vsub.f32 %v1133, 1.0
        %v1221 = vsub.f32 %v1135, 1.0
        %v1222 = vsub.f32 %v1137, 1.0
        %v1223 = vsub.f32 %v1139, 1.0
        %v1224 = vsub.f32 %v1141, 1.0
        %v1225 = vsub.f32 %v1143, 1.0
        %v1226 = vsub.f32 %v1145, 1.0
        %v1227 = vsub.f32 %v1147, 1.0
        %v1228 = vsub.f32 %v1149, 1.0
        %v1229 = vsub.f32 %v1151, 1.0
        %v1230 = vsub.f32 %v1153, 1.0
        %v1231 = vsub.f32 %v1155, 1.0
        %v1232 = vsub.f32 %v1157, 1.0
        %v1233 = vsub.f32 %v1159, 1.0
        %v1234 = vsub.f32 %v1161, 1.0
        %v1235 = vsub.f32 %v1163, 1.0
        %v1236 = vsub.f32 %v1165, 1.0
        %v1237 = vsub.f32 %v1167, 1.0
        %v1238 = vsub.f32 %v1169, 1.0
        %v1239 = vsub.f32 %v1171, 1.0
        %v1240 = vsub.f32 %v1173, 1.0
        %v1241 = vsub.f32 %v1175, 1.0
        %v1242 = vsub.f32 %v1177, 1.0
        %v1243 = vsub.f32 %v1179, 1.0
        %v1244 = vsel %vm988, %v830, %v1180
        %v1245 = vsel %vm989, %v832, %v1181
        %v1246 = vsel %vm990, %v834, %v1182
        %v1247 = vsel %vm991, %v836, %v1183
        %v1248 = vsel %vm992, %v840, %v1184
        %v1249 = vsel %vm993, %v842, %v1185
        %v1250 = vsel %vm994, %v844, %v1186
        %v1251 = vsel %vm995, %v846, %v1187
        %v1252 = vsel %vm996, %v850, %v1188
        %v1253 = vsel %vm997, %v852, %v1189
        %v1254 = vsel %vm998, %v854, %v1190
        %v1255 = vsel %vm999, %v856, %v1191
        %v1256 = vsel %vm1000, %v860, %v1192
        %v1257 = vsel %vm1001, %v862, %v1193
        %v1258 = vsel %vm1002, %v864, %v1194
        %v1259 = vsel %vm1003, %v866, %v1195
        %v1260 = vsel %vm1004, %v870, %v1196
        %v1261 = vsel %vm1005, %v872, %v1197
        %v1262 = vsel %vm1006, %v874, %v1198
        %v1263 = vsel %vm1007, %v876, %v1199
        %v1264 = vsel %vm1008, %v880, %v1200
        %v1265 = vsel %vm1009, %v882, %v1201
        %v1266 = vsel %vm1010, %v884, %v1202
        %v1267 = vsel %vm1011, %v886, %v1203
        %v1268 = vsel %vm1012, %v890, %v1204
        %v1269 = vsel %vm1013, %v892, %v1205
        %v1270 = vsel %vm1014, %v894, %v1206
        %v1271 = vsel %vm1015, %v896, %v1207
        %v1272 = vsel %vm1016, %v900, %v1208
        %v1273 = vsel %vm1017, %v902, %v1209
        %v1274 = vsel %vm1018, %v904, %v1210
        %v1275 = vsel %vm1019, %v906, %v1211
        %v1276 = vsel %vm1020, %v910, %v1212
        %v1277 = vsel %vm1021, %v912, %v1213
        %v1278 = vsel %vm1022, %v914, %v1214
        %v1279 = vsel %vm1023, %v916, %v1215
        %v1280 = vsel %vm1024, %v920, %v1216
        %v1281 = vsel %vm1025, %v922, %v1217
        %v1282 = vsel %vm1026, %v924, %v1218
        %v1283 = vsel %vm1027, %v926, %v1219
        %v1284 = vsel %vm1028, %v930, %v1220
        %v1285 = vsel %vm1029, %v932, %v1221
        %v1286 = vsel %vm1030, %v934, %v1222
        %v1287 = vsel %vm1031, %v936, %v1223
        %v1288 = vsel %vm1032, %v940, %v1224
        %v1289 = vsel %vm1033, %v942, %v1225
        %v1290 = vsel %vm1034, %v944, %v1226
        %v1291 = vsel %vm1035, %v946, %v1227
        %v1292 = vsel %vm1036, %v950, %v1228
        %v1293 = vsel %vm1037, %v952, %v1229
        %v1294 = vsel %vm1038, %v954, %v1230
        %v1295 = vsel %vm1039, %v956, %v1231
        %v1296 = vsel %vm1040, %v960, %v1232
        %v1297 = vsel %vm1041, %v962, %v1233
        %v1298 = vsel %vm1042, %v964, %v1234
        %v1299 = vsel %vm1043, %v966, %v1235
        %v1300 = vsel %vm1044, %v970, %v1236
        %v1301 = vsel %vm1045, %v972, %v1237
        %v1302 = vsel %vm1046, %v974, %v1238
        %v1303 = vsel %vm1047, %v976, %v1239
        %v1304 = vsel %vm1048, %v980, %v1240
        %v1305 = vsel %vm1049, %v982, %v1241
        %v1306 = vsel %vm1050, %v984, %v1242
        %v1307 = vsel %vm1051, %v986, %v1243
        %v1308 = vpack.c.bf16 %v1246, %v1244
        %v1309 = vpack.c.bf16 %v1247, %v1245
        %v1310 = vpack.c.bf16 %v1250, %v1248
        %v1311 = vpack.c.bf16 %v1251, %v1249
        %v1312 = vpack.c.bf16 %v1254, %v1252
        %v1313 = vpack.c.bf16 %v1255, %v1253
        %v1314 = vpack.c.bf16 %v1258, %v1256
        %v1315 = vpack.c.bf16 %v1259, %v1257
        %v1316 = vpack.c.bf16 %v1262, %v1260
        %v1317 = vpack.c.bf16 %v1263, %v1261
        %v1318 = vpack.c.bf16 %v1266, %v1264
        %v1319 = vpack.c.bf16 %v1267, %v1265
        %v1320 = vpack.c.bf16 %v1270, %v1268
        %v1321 = vpack.c.bf16 %v1271, %v1269
        %v1322 = vpack.c.bf16 %v1274, %v1272
        %v1323 = vpack.c.bf16 %v1275, %v1273
        %v1324 = vpack.c.bf16 %v1278, %v1276
        %v1325 = vpack.c.bf16 %v1279, %v1277
        %v1326 = vpack.c.bf16 %v1282, %v1280
        %v1327 = vpack.c.bf16 %v1283, %v1281
        %v1328 = vpack.c.bf16 %v1286, %v1284
        %v1329 = vpack.c.bf16 %v1287, %v1285
        %v1330 = vpack.c.bf16 %v1290, %v1288
        %v1331 = vpack.c.bf16 %v1291, %v1289
        %v1332 = vpack.c.bf16 %v1294, %v1292
        %v1333 = vpack.c.bf16 %v1295, %v1293
        %v1334 = vpack.c.bf16 %v1298, %v1296
        %v1335 = vpack.c.bf16 %v1299, %v1297
        %v1336 = vpack.c.bf16 %v1302, %v1300
        %v1337 = vpack.c.bf16 %v1303, %v1301
        %v1338 = vpack.c.bf16 %v1306, %v1304
        %v1339 = vpack.c.bf16 %v1307, %v1305
        %v1340 = vld [vmem:[#allocation8] sm:$0xff]
        %v1341 = vld [vmem:[#allocation8 + $0x8] sm:$0xff]
        %v1342 = vld [vmem:[#allocation8 + $0x10] sm:$0xff]
        %v1343 = vld [vmem:[#allocation8 + $0x18] sm:$0xff]
        %v1344 = vld [vmem:[#allocation8 + $0x20] sm:$0xff]
        %v1345 = vld [vmem:[#allocation8 + $0x28] sm:$0xff]
        %v1346 = vld [vmem:[#allocation8 + $0x30] sm:$0xff]
        %v1347 = vld [vmem:[#allocation8 + $0x38] sm:$0xff]
        %v1348 = vld [vmem:[#allocation8 + $0x40] sm:$0xff]
        %v1349 = vld [vmem:[#allocation8 + $0x48] sm:$0xff]
        %v1350 = vld [vmem:[#allocation8 + $0x50] sm:$0xff]
        %v1351 = vld [vmem:[#allocation8 + $0x58] sm:$0xff]
        %v1352 = vld [vmem:[#allocation8 + $0x60] sm:$0xff]
        %v1353 = vld [vmem:[#allocation8 + $0x68] sm:$0xff]
        %v1354 = vld [vmem:[#allocation8 + $0x70] sm:$0xff]
        %v1355 = vld [vmem:[#allocation8 + $0x78] sm:$0xff]
        %v1356 = vld [vmem:[#allocation8 + $0x80] sm:$0xff]
        %v1357 = vld [vmem:[#allocation8 + $0x88] sm:$0xff]
        %v1358 = vld [vmem:[#allocation8 + $0x90] sm:$0xff]
        %v1359 = vld [vmem:[#allocation8 + $0x98] sm:$0xff]
        %v1360 = vld [vmem:[#allocation8 + $0xa0] sm:$0xff]
        %v1361 = vld [vmem:[#allocation8 + $0xa8] sm:$0xff]
        %v1362 = vld [vmem:[#allocation8 + $0xb0] sm:$0xff]
        %v1363 = vld [vmem:[#allocation8 + $0xb8] sm:$0xff]
        %v1364 = vld [vmem:[#allocation8 + $0xc0] sm:$0xff]
        %v1365 = vld [vmem:[#allocation8 + $0xc8] sm:$0xff]
        %v1366 = vld [vmem:[#allocation8 + $0xd0] sm:$0xff]
        %v1367 = vld [vmem:[#allocation8 + $0xd8] sm:$0xff]
        %v1368 = vld [vmem:[#allocation8 + $0xe0] sm:$0xff]
        %v1369 = vld [vmem:[#allocation8 + $0xe8] sm:$0xff]
        %v1370 = vld [vmem:[#allocation8 + $0xf0] sm:$0xff]
        %v1371 = vld [vmem:[#allocation8 + $0xf8] sm:$0xff]
        %v1372 = vld [vmem:[%s4] sm:$0x3]
        %v1374 = vlaneseq
        %v1375 = vshrl.u32 %v1374, 7
        %v1376 = vsub.s32 0, %v1375
        %v1377 = vrot.slane %v1372, %v1376
        %v1378 = vlaneseq
        %v1379 = vshrl.u32 %v1378, 7
        %v1380 = vsub.s32 1, %v1379
        %v1381 = vrot.slane %v1372, %v1380
        %v1416 = vunpack.c.l.b16 %v1340
        %v1417 = vunpack.c.h.b16 %v1340
        %v1418 = vunpack.c.l.b16 %v1341
        %v1419 = vunpack.c.h.b16 %v1341
        %v1420 = vunpack.c.l.b16 %v1342
        %v1421 = vunpack.c.h.b16 %v1342
        %v1422 = vunpack.c.l.b16 %v1343
        %v1423 = vunpack.c.h.b16 %v1343
        %v1424 = vunpack.c.l.b16 %v1344
        %v1425 = vunpack.c.h.b16 %v1344
        %v1426 = vunpack.c.l.b16 %v1345
        %v1427 = vunpack.c.h.b16 %v1345
        %v1428 = vunpack.c.l.b16 %v1346
        %v1429 = vunpack.c.h.b16 %v1346
        %v1430 = vunpack.c.l.b16 %v1347
        %v1431 = vunpack.c.h.b16 %v1347
        %v1432 = vunpack.c.l.b16 %v1348
        %v1433 = vunpack.c.h.b16 %v1348
        %v1434 = vunpack.c.l.b16 %v1349
        %v1435 = vunpack.c.h.b16 %v1349
        %v1436 = vunpack.c.l.b16 %v1350
        %v1437 = vunpack.c.h.b16 %v1350
        %v1438 = vunpack.c.l.b16 %v1351
        %v1439 = vunpack.c.h.b16 %v1351
        %v1440 = vunpack.c.l.b16 %v1352
        %v1441 = vunpack.c.h.b16 %v1352
        %v1442 = vunpack.c.l.b16 %v1353
        %v1443 = vunpack.c.h.b16 %v1353
        %v1444 = vunpack.c.l.b16 %v1354
        %v1445 = vunpack.c.h.b16 %v1354
        %v1446 = vunpack.c.l.b16 %v1355
        %v1447 = vunpack.c.h.b16 %v1355
        %v1448 = vunpack.c.l.b16 %v1356
        %v1449 = vunpack.c.h.b16 %v1356
        %v1450 = vunpack.c.l.b16 %v1357
        %v1451 = vunpack.c.h.b16 %v1357
        %v1452 = vunpack.c.l.b16 %v1358
        %v1453 = vunpack.c.h.b16 %v1358
        %v1454 = vunpack.c.l.b16 %v1359
        %v1455 = vunpack.c.h.b16 %v1359
        %v1456 = vunpack.c.l.b16 %v1360
        %v1457 = vunpack.c.h.b16 %v1360
        %v1458 = vunpack.c.l.b16 %v1361
        %v1459 = vunpack.c.h.b16 %v1361
        %v1460 = vunpack.c.l.b16 %v1362
        %v1461 = vunpack.c.h.b16 %v1362
        %v1462 = vunpack.c.l.b16 %v1363
        %v1463 = vunpack.c.h.b16 %v1363
        %v1464 = vunpack.c.l.b16 %v1364
        %v1465 = vunpack.c.h.b16 %v1364
        %v1466 = vunpack.c.l.b16 %v1365
        %v1467 = vunpack.c.h.b16 %v1365
        %v1468 = vunpack.c.l.b16 %v1366
        %v1469 = vunpack.c.h.b16 %v1366
        %v1470 = vunpack.c.l.b16 %v1367
        %v1471 = vunpack.c.h.b16 %v1367
        %v1472 = vunpack.c.l.b16 %v1368
        %v1473 = vunpack.c.h.b16 %v1368
        %v1474 = vunpack.c.l.b16 %v1369
        %v1475 = vunpack.c.h.b16 %v1369
        %v1476 = vunpack.c.l.b16 %v1370
        %v1477 = vunpack.c.h.b16 %v1370
        %v1478 = vunpack.c.l.b16 %v1371
        %v1479 = vunpack.c.h.b16 %v1371
        %v1480 = vpack.c.b16 %v1418, %v1416
        %v1481 = vpack.c.b16 %v1419, %v1417
        %v1482 = vpack.c.b16 %v1422, %v1420
        %v1483 = vpack.c.b16 %v1423, %v1421
        %v1484 = vpack.c.b16 %v1426, %v1424
        %v1485 = vpack.c.b16 %v1427, %v1425
        %v1486 = vpack.c.b16 %v1430, %v1428
        %v1487 = vpack.c.b16 %v1431, %v1429
        %v1488 = vpack.c.b16 %v1434, %v1432
        %v1489 = vpack.c.b16 %v1435, %v1433
        %v1490 = vpack.c.b16 %v1438, %v1436
        %v1491 = vpack.c.b16 %v1439, %v1437
        %v1492 = vpack.c.b16 %v1442, %v1440
        %v1493 = vpack.c.b16 %v1443, %v1441
        %v1494 = vpack.c.b16 %v1446, %v1444
        %v1495 = vpack.c.b16 %v1447, %v1445
        %v1496 = vpack.c.b16 %v1450, %v1448
        %v1497 = vpack.c.b16 %v1451, %v1449
        %v1498 = vpack.c.b16 %v1454, %v1452
        %v1499 = vpack.c.b16 %v1455, %v1453
        %v1500 = vpack.c.b16 %v1458, %v1456
        %v1501 = vpack.c.b16 %v1459, %v1457
        %v1502 = vpack.c.b16 %v1462, %v1460
        %v1503 = vpack.c.b16 %v1463, %v1461
        %v1504 = vpack.c.b16 %v1466, %v1464
        %v1505 = vpack.c.b16 %v1467, %v1465
        %v1506 = vpack.c.b16 %v1470, %v1468
        %v1507 = vpack.c.b16 %v1471, %v1469
        %v1508 = vpack.c.b16 %v1474, %v1472
        %v1509 = vpack.c.b16 %v1475, %v1473
        %v1510 = vpack.c.b16 %v1478, %v1476
        %v1511 = vpack.c.b16 %v1479, %v1477
        %1544 = vmatprep.subr.bf16.mxu0 %v1495
        %1545 = vmatpush1.bf16.msra.mxu0 %v1494
        %1546 = vmatprep.subr.bf16.mxu0 %v1493
        %1547 = vmatpush1.bf16.msra.mxu0 %v1492
        %1548 = vmatprep.subr.bf16.mxu0 %v1491
        %1549 = vmatpush1.bf16.msra.mxu0 %v1490
        %1550 = vmatprep.subr.bf16.mxu0 %v1489
        %1551 = vmatpush1.bf16.msra.mxu0 %v1488
        %1552 = vmatprep.subr.bf16.mxu0 %v1487
        %1553 = vmatpush1.bf16.msra.mxu0 %v1486
        %1554 = vmatprep.subr.bf16.mxu0 %v1485
        %1555 = vmatpush1.bf16.msra.mxu0 %v1484
        %1556 = vmatprep.subr.bf16.mxu0 %v1483
        %1557 = vmatpush1.bf16.msra.mxu0 %v1482
        %1558 = vmatprep.subr.bf16.mxu0 %v1481
        %1559 = vmatpush1.bf16.msra.mxu0 %v1480
        %1560 = vmatprep.subr.bf16.mxu0 %v1511
        %1561 = vmatpush2.bf16.msra.mxu0 %v1510
        %1562 = vmatprep.subr.bf16.mxu0 %v1509
        %1563 = vmatpush2.bf16.msra.mxu0 %v1508
        %1564 = vmatprep.subr.bf16.mxu0 %v1507
        %1565 = vmatpush2.bf16.msra.mxu0 %v1506
        %1566 = vmatprep.subr.bf16.mxu0 %v1505
        %1567 = vmatpush2.bf16.msra.mxu0 %v1504
        %1568 = vmatprep.subr.bf16.mxu0 %v1503
        %1569 = vmatpush2.bf16.msra.mxu0 %v1502
        %1570 = vmatprep.subr.bf16.mxu0 %v1501
        %1571 = vmatpush2.bf16.msra.mxu0 %v1500
        %1572 = vmatprep.subr.bf16.mxu0 %v1499
        %1573 = vmatpush2.bf16.msra.mxu0 %v1498
        %1574 = vmatprep.subr.bf16.mxu0 %v1497
        %1575 = vmatpush2.bf16.msra.mxu0 %v1496
        %1576 = vmatprep.mubr.bf16.mxu0 %v1309
        %1577 = vmatmul.mubr.bf16.gmra.mxu0 %v1308
        %v1578 = vpop.f32.mrf.mxu0
        %v1579 = vadd.f32 %v1377, %v1578
        %v1580 = vpop.f32.mrf.mxu0
        %v1581 = vadd.f32 %v1381, %v1580
        %v1582 = vpop.f32.mrf.mxu0
        %v1583 = vadd.f32 %v1377, %v1582
        %v1584 = vpop.f32.mrf.mxu0
        %v1585 = vadd.f32 %v1381, %v1584
        %1586 = vmatprep.mubr.bf16.mxu0 %v1311
        %1587 = vmatmul.mubr.bf16.gmra.mxu0 %v1310
        %v1588 = vpop.f32.mrf.mxu0
        %v1589 = vadd.f32 %v1377, %v1588
        %v1590 = vpop.f32.mrf.mxu0
        %v1591 = vadd.f32 %v1381, %v1590
        %v1592 = vpop.f32.mrf.mxu0
        %v1593 = vadd.f32 %v1377, %v1592
        %v1594 = vpop.f32.mrf.mxu0
        %v1595 = vadd.f32 %v1381, %v1594
        %1596 = vmatprep.mubr.bf16.mxu0 %v1313
        %1597 = vmatmul.mubr.bf16.gmra.mxu0 %v1312
        %v1598 = vpop.f32.mrf.mxu0
        %v1599 = vadd.f32 %v1377, %v1598
        %v1600 = vpop.f32.mrf.mxu0
        %v1601 = vadd.f32 %v1381, %v1600
        %v1602 = vpop.f32.mrf.mxu0
        %v1603 = vadd.f32 %v1377, %v1602
        %v1604 = vpop.f32.mrf.mxu0
        %v1605 = vadd.f32 %v1381, %v1604
        %1606 = vmatprep.mubr.bf16.mxu0 %v1315
        %1607 = vmatmul.mubr.bf16.gmra.mxu0 %v1314
        %v1608 = vpop.f32.mrf.mxu0
        %v1609 = vadd.f32 %v1377, %v1608
        %v1610 = vpop.f32.mrf.mxu0
        %v1611 = vadd.f32 %v1381, %v1610
        %v1612 = vpop.f32.mrf.mxu0
        %v1613 = vadd.f32 %v1377, %v1612
        %v1614 = vpop.f32.mrf.mxu0
        %v1615 = vadd.f32 %v1381, %v1614
        %1616 = vmatprep.mubr.bf16.mxu0 %v1317
        %1617 = vmatmul.mubr.bf16.gmra.mxu0 %v1316
        %v1618 = vpop.f32.mrf.mxu0
        %v1619 = vadd.f32 %v1377, %v1618
        %v1620 = vpop.f32.mrf.mxu0
        %v1621 = vadd.f32 %v1381, %v1620
        %v1622 = vpop.f32.mrf.mxu0
        %v1623 = vadd.f32 %v1377, %v1622
        %v1624 = vpop.f32.mrf.mxu0
        %v1625 = vadd.f32 %v1381, %v1624
        %1626 = vmatprep.mubr.bf16.mxu0 %v1319
        %1627 = vmatmul.mubr.bf16.gmra.mxu0 %v1318
        %v1628 = vpop.f32.mrf.mxu0
        %v1629 = vadd.f32 %v1377, %v1628
        %v1630 = vpop.f32.mrf.mxu0
        %v1631 = vadd.f32 %v1381, %v1630
        %v1632 = vpop.f32.mrf.mxu0
        %v1633 = vadd.f32 %v1377, %v1632
        %v1634 = vpop.f32.mrf.mxu0
        %v1635 = vadd.f32 %v1381, %v1634
        %1636 = vmatprep.mubr.bf16.mxu0 %v1321
        %1637 = vmatmul.mubr.bf16.gmra.mxu0 %v1320
        %v1638 = vpop.f32.mrf.mxu0
        %v1639 = vadd.f32 %v1377, %v1638
        %v1640 = vpop.f32.mrf.mxu0
        %v1641 = vadd.f32 %v1381, %v1640
        %v1642 = vpop.f32.mrf.mxu0
        %v1643 = vadd.f32 %v1377, %v1642
        %v1644 = vpop.f32.mrf.mxu0
        %v1645 = vadd.f32 %v1381, %v1644
        %1646 = vmatprep.mubr.bf16.mxu0 %v1323
        %1647 = vmatmul.mubr.bf16.gmra.mxu0 %v1322
        %v1648 = vpop.f32.mrf.mxu0
        %v1649 = vadd.f32 %v1377, %v1648
        %v1650 = vpop.f32.mrf.mxu0
        %v1651 = vadd.f32 %v1381, %v1650
        %v1652 = vpop.f32.mrf.mxu0
        %v1653 = vadd.f32 %v1377, %v1652
        %v1654 = vpop.f32.mrf.mxu0
        %v1655 = vadd.f32 %v1381, %v1654
        %1656 = vmatprep.mubr.bf16.mxu0 %v1325
        %1657 = vmatmul.mubr.bf16.gmra.mxu0 %v1324
        %v1658 = vpop.f32.mrf.mxu0
        %v1659 = vadd.f32 %v1377, %v1658
        %v1660 = vpop.f32.mrf.mxu0
        %v1661 = vadd.f32 %v1381, %v1660
        %v1662 = vpop.f32.mrf.mxu0
        %v1663 = vadd.f32 %v1377, %v1662
        %v1664 = vpop.f32.mrf.mxu0
        %v1665 = vadd.f32 %v1381, %v1664
        %1666 = vmatprep.mubr.bf16.mxu0 %v1327
        %1667 = vmatmul.mubr.bf16.gmra.mxu0 %v1326
        %v1668 = vpop.f32.mrf.mxu0
        %v1669 = vadd.f32 %v1377, %v1668
        %v1670 = vpop.f32.mrf.mxu0
        %v1671 = vadd.f32 %v1381, %v1670
        %v1672 = vpop.f32.mrf.mxu0
        %v1673 = vadd.f32 %v1377, %v1672
        %v1674 = vpop.f32.mrf.mxu0
        %v1675 = vadd.f32 %v1381, %v1674
        %1676 = vmatprep.mubr.bf16.mxu0 %v1329
        %1677 = vmatmul.mubr.bf16.gmra.mxu0 %v1328
        %v1678 = vpop.f32.mrf.mxu0
        %v1679 = vadd.f32 %v1377, %v1678
        %v1680 = vpop.f32.mrf.mxu0
        %v1681 = vadd.f32 %v1381, %v1680
        %v1682 = vpop.f32.mrf.mxu0
        %v1683 = vadd.f32 %v1377, %v1682
        %v1684 = vpop.f32.mrf.mxu0
        %v1685 = vadd.f32 %v1381, %v1684
        %1686 = vmatprep.mubr.bf16.mxu0 %v1331
        %1687 = vmatmul.mubr.bf16.gmra.mxu0 %v1330
        %v1688 = vpop.f32.mrf.mxu0
        %v1689 = vadd.f32 %v1377, %v1688
        %v1690 = vpop.f32.mrf.mxu0
        %v1691 = vadd.f32 %v1381, %v1690
        %v1692 = vpop.f32.mrf.mxu0
        %v1693 = vadd.f32 %v1377, %v1692
        %v1694 = vpop.f32.mrf.mxu0
        %v1695 = vadd.f32 %v1381, %v1694
        %1696 = vmatprep.mubr.bf16.mxu0 %v1333
        %1697 = vmatmul.mubr.bf16.gmra.mxu0 %v1332
        %v1698 = vpop.f32.mrf.mxu0
        %v1699 = vadd.f32 %v1377, %v1698
        %v1700 = vpop.f32.mrf.mxu0
        %v1701 = vadd.f32 %v1381, %v1700
        %v1702 = vpop.f32.mrf.mxu0
        %v1703 = vadd.f32 %v1377, %v1702
        %v1704 = vpop.f32.mrf.mxu0
        %v1705 = vadd.f32 %v1381, %v1704
        %1706 = vmatprep.mubr.bf16.mxu0 %v1335
        %1707 = vmatmul.mubr.bf16.gmra.mxu0 %v1334
        %v1708 = vpop.f32.mrf.mxu0
        %v1709 = vadd.f32 %v1377, %v1708
        %v1710 = vpop.f32.mrf.mxu0
        %v1711 = vadd.f32 %v1381, %v1710
        %v1712 = vpop.f32.mrf.mxu0
        %v1713 = vadd.f32 %v1377, %v1712
        %v1714 = vpop.f32.mrf.mxu0
        %v1715 = vadd.f32 %v1381, %v1714
        %1716 = vmatprep.mubr.bf16.mxu0 %v1337
        %1717 = vmatmul.mubr.bf16.gmra.mxu0 %v1336
        %v1718 = vpop.f32.mrf.mxu0
        %v1719 = vadd.f32 %v1377, %v1718
        %v1720 = vpop.f32.mrf.mxu0
        %v1721 = vadd.f32 %v1381, %v1720
        %v1722 = vpop.f32.mrf.mxu0
        %v1723 = vadd.f32 %v1377, %v1722
        %v1724 = vpop.f32.mrf.mxu0
        %v1725 = vadd.f32 %v1381, %v1724
        %1726 = vmatprep.mubr.bf16.mxu0 %v1339
        %1727 = vmatmul.mubr.bf16.gmra.mxu0 %v1338
        %v1728 = vpop.f32.mrf.mxu0
        %v1729 = vadd.f32 %v1377, %v1728
        %v1730 = vpop.f32.mrf.mxu0
        %v1731 = vadd.f32 %v1381, %v1730
        %v1732 = vpop.f32.mrf.mxu0
        %v1733 = vadd.f32 %v1377, %v1732
        %v1734 = vpop.f32.mrf.mxu0
        %v1735 = vadd.f32 %v1381, %v1734
        %1736 = vdwg.mxu0
        %vm1737 = vcmp.gt.f32.partialorder %v1579, 0.0
        %vm1738 = vcmp.gt.f32.partialorder %v1581, 0.0
        %vm1739 = vcmp.gt.f32.partialorder %v1583, 0.0
        %vm1740 = vcmp.gt.f32.partialorder %v1585, 0.0
        %vm1741 = vcmp.gt.f32.partialorder %v1589, 0.0
        %vm1742 = vcmp.gt.f32.partialorder %v1591, 0.0
        %vm1743 = vcmp.gt.f32.partialorder %v1593, 0.0
        %vm1744 = vcmp.gt.f32.partialorder %v1595, 0.0
        %vm1745 = vcmp.gt.f32.partialorder %v1599, 0.0
        %vm1746 = vcmp.gt.f32.partialorder %v1601, 0.0
        %vm1747 = vcmp.gt.f32.partialorder %v1603, 0.0
        %vm1748 = vcmp.gt.f32.partialorder %v1605, 0.0
        %vm1749 = vcmp.gt.f32.partialorder %v1609, 0.0
        %vm1750 = vcmp.gt.f32.partialorder %v1611, 0.0
        %vm1751 = vcmp.gt.f32.partialorder %v1613, 0.0
        %vm1752 = vcmp.gt.f32.partialorder %v1615, 0.0
        %vm1753 = vcmp.gt.f32.partialorder %v1619, 0.0
        %vm1754 = vcmp.gt.f32.partialorder %v1621, 0.0
        %vm1755 = vcmp.gt.f32.partialorder %v1623, 0.0
        %vm1756 = vcmp.gt.f32.partialorder %v1625, 0.0
        %vm1757 = vcmp.gt.f32.partialorder %v1629, 0.0
        %vm1758 = vcmp.gt.f32.partialorder %v1631, 0.0
        %vm1759 = vcmp.gt.f32.partialorder %v1633, 0.0
        %vm1760 = vcmp.gt.f32.partialorder %v1635, 0.0
        %vm1761 = vcmp.gt.f32.partialorder %v1639, 0.0
        %vm1762 = vcmp.gt.f32.partialorder %v1641, 0.0
        %vm1763 = vcmp.gt.f32.partialorder %v1643, 0.0
        %vm1764 = vcmp.gt.f32.partialorder %v1645, 0.0
        %vm1765 = vcmp.gt.f32.partialorder %v1649, 0.0
        %vm1766 = vcmp.gt.f32.partialorder %v1651, 0.0
        %vm1767 = vcmp.gt.f32.partialorder %v1653, 0.0
        %vm1768 = vcmp.gt.f32.partialorder %v1655, 0.0
        %vm1769 = vcmp.gt.f32.partialorder %v1659, 0.0
        %vm1770 = vcmp.gt.f32.partialorder %v1661, 0.0
        %vm1771 = vcmp.gt.f32.partialorder %v1663, 0.0
        %vm1772 = vcmp.gt.f32.partialorder %v1665, 0.0
        %vm1773 = vcmp.gt.f32.partialorder %v1669, 0.0
        %vm1774 = vcmp.gt.f32.partialorder %v1671, 0.0
        %vm1775 = vcmp.gt.f32.partialorder %v1673, 0.0
        %vm1776 = vcmp.gt.f32.partialorder %v1675, 0.0
        %vm1777 = vcmp.gt.f32.partialorder %v1679, 0.0
        %vm1778 = vcmp.gt.f32.partialorder %v1681, 0.0
        %vm1779 = vcmp.gt.f32.partialorder %v1683, 0.0
        %vm1780 = vcmp.gt.f32.partialorder %v1685, 0.0
        %vm1781 = vcmp.gt.f32.partialorder %v1689, 0.0
        %vm1782 = vcmp.gt.f32.partialorder %v1691, 0.0
        %vm1783 = vcmp.gt.f32.partialorder %v1693, 0.0
        %vm1784 = vcmp.gt.f32.partialorder %v1695, 0.0
        %vm1785 = vcmp.gt.f32.partialorder %v1699, 0.0
        %vm1786 = vcmp.gt.f32.partialorder %v1701, 0.0
        %vm1787 = vcmp.gt.f32.partialorder %v1703, 0.0
        %vm1788 = vcmp.gt.f32.partialorder %v1705, 0.0
        %vm1789 = vcmp.gt.f32.partialorder %v1709, 0.0
        %vm1790 = vcmp.gt.f32.partialorder %v1711, 0.0
        %vm1791 = vcmp.gt.f32.partialorder %v1713, 0.0
        %vm1792 = vcmp.gt.f32.partialorder %v1715, 0.0
        %vm1793 = vcmp.gt.f32.partialorder %v1719, 0.0
        %vm1794 = vcmp.gt.f32.partialorder %v1721, 0.0
        %vm1795 = vcmp.gt.f32.partialorder %v1723, 0.0
        %vm1796 = vcmp.gt.f32.partialorder %v1725, 0.0
        %vm1797 = vcmp.gt.f32.partialorder %v1729, 0.0
        %vm1798 = vcmp.gt.f32.partialorder %v1731, 0.0
        %vm1799 = vcmp.gt.f32.partialorder %v1733, 0.0
        %vm1800 = vcmp.gt.f32.partialorder %v1735, 0.0
        %v1801 = vmul.f32 %v1579, 1.442695
        %v1802 = vpow.pop %v1801
        %v1803 = vmul.f32 %v1581, 1.442695
        %v1804 = vpow.pop %v1803
        %v1805 = vmul.f32 %v1583, 1.442695
        %v1806 = vpow.pop %v1805
        %v1807 = vmul.f32 %v1585, 1.442695
        %v1808 = vpow.pop %v1807
        %v1809 = vmul.f32 %v1589, 1.442695
        %v1810 = vpow.pop %v1809
        %v1811 = vmul.f32 %v1591, 1.442695
        %v1812 = vpow.pop %v1811
        %v1813 = vmul.f32 %v1593, 1.442695
        %v1814 = vpow.pop %v1813
        %v1815 = vmul.f32 %v1595, 1.442695
        %v1816 = vpow.pop %v1815
        %v1817 = vmul.f32 %v1599, 1.442695
        %v1818 = vpow.pop %v1817
        %v1819 = vmul.f32 %v1601, 1.442695
        %v1820 = vpow.pop %v1819
        %v1821 = vmul.f32 %v1603, 1.442695
        %v1822 = vpow.pop %v1821
        %v1823 = vmul.f32 %v1605, 1.442695
        %v1824 = vpow.pop %v1823
        %v1825 = vmul.f32 %v1609, 1.442695
        %v1826 = vpow.pop %v1825
        %v1827 = vmul.f32 %v1611, 1.442695
        %v1828 = vpow.pop %v1827
        %v1829 = vmul.f32 %v1613, 1.442695
        %v1830 = vpow.pop %v1829
        %v1831 = vmul.f32 %v1615, 1.442695
        %v1832 = vpow.pop %v1831
        %v1833 = vmul.f32 %v1619, 1.442695
        %v1834 = vpow.pop %v1833
        %v1835 = vmul.f32 %v1621, 1.442695
        %v1836 = vpow.pop %v1835
        %v1837 = vmul.f32 %v1623, 1.442695
        %v1838 = vpow.pop %v1837
        %v1839 = vmul.f32 %v1625, 1.442695
        %v1840 = vpow.pop %v1839
        %v1841 = vmul.f32 %v1629, 1.442695
        %v1842 = vpow.pop %v1841
        %v1843 = vmul.f32 %v1631, 1.442695
        %v1844 = vpow.pop %v1843
        %v1845 = vmul.f32 %v1633, 1.442695
        %v1846 = vpow.pop %v1845
        %v1847 = vmul.f32 %v1635, 1.442695
        %v1848 = vpow.pop %v1847
        %v1849 = vmul.f32 %v1639, 1.442695
        %v1850 = vpow.pop %v1849
        %v1851 = vmul.f32 %v1641, 1.442695
        %v1852 = vpow.pop %v1851
        %v1853 = vmul.f32 %v1643, 1.442695
        %v1854 = vpow.pop %v1853
        %v1855 = vmul.f32 %v1645, 1.442695
        %v1856 = vpow.pop %v1855
        %v1857 = vmul.f32 %v1649, 1.442695
        %v1858 = vpow.pop %v1857
        %v1859 = vmul.f32 %v1651, 1.442695
        %v1860 = vpow.pop %v1859
        %v1861 = vmul.f32 %v1653, 1.442695
        %v1862 = vpow.pop %v1861
        %v1863 = vmul.f32 %v1655, 1.442695
        %v1864 = vpow.pop %v1863
        %v1865 = vmul.f32 %v1659, 1.442695
        %v1866 = vpow.pop %v1865
        %v1867 = vmul.f32 %v1661, 1.442695
        %v1868 = vpow.pop %v1867
        %v1869 = vmul.f32 %v1663, 1.442695
        %v1870 = vpow.pop %v1869
        %v1871 = vmul.f32 %v1665, 1.442695
        %v1872 = vpow.pop %v1871
        %v1873 = vmul.f32 %v1669, 1.442695
        %v1874 = vpow.pop %v1873
        %v1875 = vmul.f32 %v1671, 1.442695
        %v1876 = vpow.pop %v1875
        %v1877 = vmul.f32 %v1673, 1.442695
        %v1878 = vpow.pop %v1877
        %v1879 = vmul.f32 %v1675, 1.442695
        %v1880 = vpow.pop %v1879
        %v1881 = vmul.f32 %v1679, 1.442695
        %v1882 = vpow.pop %v1881
        %v1883 = vmul.f32 %v1681, 1.442695
        %v1884 = vpow.pop %v1883
        %v1885 = vmul.f32 %v1683, 1.442695
        %v1886 = vpow.pop %v1885
        %v1887 = vmul.f32 %v1685, 1.442695
        %v1888 = vpow.pop %v1887
        %v1889 = vmul.f32 %v1689, 1.442695
        %v1890 = vpow.pop %v1889
        %v1891 = vmul.f32 %v1691, 1.442695
        %v1892 = vpow.pop %v1891
        %v1893 = vmul.f32 %v1693, 1.442695
        %v1894 = vpow.pop %v1893
        %v1895 = vmul.f32 %v1695, 1.442695
        %v1896 = vpow.pop %v1895
        %v1897 = vmul.f32 %v1699, 1.442695
        %v1898 = vpow.pop %v1897
        %v1899 = vmul.f32 %v1701, 1.442695
        %v1900 = vpow.pop %v1899
        %v1901 = vmul.f32 %v1703, 1.442695
        %v1902 = vpow.pop %v1901
        %v1903 = vmul.f32 %v1705, 1.442695
        %v1904 = vpow.pop %v1903
        %v1905 = vmul.f32 %v1709, 1.442695
        %v1906 = vpow.pop %v1905
        %v1907 = vmul.f32 %v1711, 1.442695
        %v1908 = vpow.pop %v1907
        %v1909 = vmul.f32 %v1713, 1.442695
        %v1910 = vpow.pop %v1909
        %v1911 = vmul.f32 %v1715, 1.442695
        %v1912 = vpow.pop %v1911
        %v1913 = vmul.f32 %v1719, 1.442695
        %v1914 = vpow.pop %v1913
        %v1915 = vmul.f32 %v1721, 1.442695
        %v1916 = vpow.pop %v1915
        %v1917 = vmul.f32 %v1723, 1.442695
        %v1918 = vpow.pop %v1917
        %v1919 = vmul.f32 %v1725, 1.442695
        %v1920 = vpow.pop %v1919
        %v1921 = vmul.f32 %v1729, 1.442695
        %v1922 = vpow.pop %v1921
        %v1923 = vmul.f32 %v1731, 1.442695
        %v1924 = vpow.pop %v1923
        %v1925 = vmul.f32 %v1733, 1.442695
        %v1926 = vpow.pop %v1925
        %v1927 = vmul.f32 %v1735, 1.442695
        %v1928 = vpow.pop %v1927
        %v1929 = vsub.f32 %v1802, 1.0
        %v1930 = vsub.f32 %v1804, 1.0
        %v1931 = vsub.f32 %v1806, 1.0
        %v1932 = vsub.f32 %v1808, 1.0
        %v1933 = vsub.f32 %v1810, 1.0
        %v1934 = vsub.f32 %v1812, 1.0
        %v1935 = vsub.f32 %v1814, 1.0
        %v1936 = vsub.f32 %v1816, 1.0
        %v1937 = vsub.f32 %v1818, 1.0
        %v1938 = vsub.f32 %v1820, 1.0
        %v1939 = vsub.f32 %v1822, 1.0
        %v1940 = vsub.f32 %v1824, 1.0
        %v1941 = vsub.f32 %v1826, 1.0
        %v1942 = vsub.f32 %v1828, 1.0
        %v1943 = vsub.f32 %v1830, 1.0
        %v1944 = vsub.f32 %v1832, 1.0
        %v1945 = vsub.f32 %v1834, 1.0
        %v1946 = vsub.f32 %v1836, 1.0
        %v1947 = vsub.f32 %v1838, 1.0
        %v1948 = vsub.f32 %v1840, 1.0
        %v1949 = vsub.f32 %v1842, 1.0
        %v1950 = vsub.f32 %v1844, 1.0
        %v1951 = vsub.f32 %v1846, 1.0
        %v1952 = vsub.f32 %v1848, 1.0
        %v1953 = vsub.f32 %v1850, 1.0
        %v1954 = vsub.f32 %v1852, 1.0
        %v1955 = vsub.f32 %v1854, 1.0
        %v1956 = vsub.f32 %v1856, 1.0
        %v1957 = vsub.f32 %v1858, 1.0
        %v1958 = vsub.f32 %v1860, 1.0
        %v1959 = vsub.f32 %v1862, 1.0
        %v1960 = vsub.f32 %v1864, 1.0
        %v1961 = vsub.f32 %v1866, 1.0
        %v1962 = vsub.f32 %v1868, 1.0
        %v1963 = vsub.f32 %v1870, 1.0
        %v1964 = vsub.f32 %v1872, 1.0
        %v1965 = vsub.f32 %v1874, 1.0
        %v1966 = vsub.f32 %v1876, 1.0
        %v1967 = vsub.f32 %v1878, 1.0
        %v1968 = vsub.f32 %v1880, 1.0
        %v1969 = vsub.f32 %v1882, 1.0
        %v1970 = vsub.f32 %v1884, 1.0
        %v1971 = vsub.f32 %v1886, 1.0
        %v1972 = vsub.f32 %v1888, 1.0
        %v1973 = vsub.f32 %v1890, 1.0
        %v1974 = vsub.f32 %v1892, 1.0
        %v1975 = vsub.f32 %v1894, 1.0
        %v1976 = vsub.f32 %v1896, 1.0
        %v1977 = vsub.f32 %v1898, 1.0
        %v1978 = vsub.f32 %v1900, 1.0
        %v1979 = vsub.f32 %v1902, 1.0
        %v1980 = vsub.f32 %v1904, 1.0
        %v1981 = vsub.f32 %v1906, 1.0
        %v1982 = vsub.f32 %v1908, 1.0
        %v1983 = vsub.f32 %v1910, 1.0
        %v1984 = vsub.f32 %v1912, 1.0
        %v1985 = vsub.f32 %v1914, 1.0
        %v1986 = vsub.f32 %v1916, 1.0
        %v1987 = vsub.f32 %v1918, 1.0
        %v1988 = vsub.f32 %v1920, 1.0
        %v1989 = vsub.f32 %v1922, 1.0
        %v1990 = vsub.f32 %v1924, 1.0
        %v1991 = vsub.f32 %v1926, 1.0
        %v1992 = vsub.f32 %v1928, 1.0
        %v1993 = vsel %vm1737, %v1579, %v1929
        %v1994 = vsel %vm1738, %v1581, %v1930
        %v1995 = vsel %vm1739, %v1583, %v1931
        %v1996 = vsel %vm1740, %v1585, %v1932
        %v1997 = vsel %vm1741, %v1589, %v1933
        %v1998 = vsel %vm1742, %v1591, %v1934
        %v1999 = vsel %vm1743, %v1593, %v1935
        %v2000 = vsel %vm1744, %v1595, %v1936
        %v2001 = vsel %vm1745, %v1599, %v1937
        %v2002 = vsel %vm1746, %v1601, %v1938
        %v2003 = vsel %vm1747, %v1603, %v1939
        %v2004 = vsel %vm1748, %v1605, %v1940
        %v2005 = vsel %vm1749, %v1609, %v1941
        %v2006 = vsel %vm1750, %v1611, %v1942
        %v2007 = vsel %vm1751, %v1613, %v1943
        %v2008 = vsel %vm1752, %v1615, %v1944
        %v2009 = vsel %vm1753, %v1619, %v1945
        %v2010 = vsel %vm1754, %v1621, %v1946
        %v2011 = vsel %vm1755, %v1623, %v1947
        %v2012 = vsel %vm1756, %v1625, %v1948
        %v2013 = vsel %vm1757, %v1629, %v1949
        %v2014 = vsel %vm1758, %v1631, %v1950
        %v2015 = vsel %vm1759, %v1633, %v1951
        %v2016 = vsel %vm1760, %v1635, %v1952
        %v2017 = vsel %vm1761, %v1639, %v1953
        %v2018 = vsel %vm1762, %v1641, %v1954
        %v2019 = vsel %vm1763, %v1643, %v1955
        %v2020 = vsel %vm1764, %v1645, %v1956
        %v2021 = vsel %vm1765, %v1649, %v1957
        %v2022 = vsel %vm1766, %v1651, %v1958
        %v2023 = vsel %vm1767, %v1653, %v1959
        %v2024 = vsel %vm1768, %v1655, %v1960
        %v2025 = vsel %vm1769, %v1659, %v1961
        %v2026 = vsel %vm1770, %v1661, %v1962
        %v2027 = vsel %vm1771, %v1663, %v1963
        %v2028 = vsel %vm1772, %v1665, %v1964
        %v2029 = vsel %vm1773, %v1669, %v1965
        %v2030 = vsel %vm1774, %v1671, %v1966
        %v2031 = vsel %vm1775, %v1673, %v1967
        %v2032 = vsel %vm1776, %v1675, %v1968
        %v2033 = vsel %vm1777, %v1679, %v1969
        %v2034 = vsel %vm1778, %v1681, %v1970
        %v2035 = vsel %vm1779, %v1683, %v1971
        %v2036 = vsel %vm1780, %v1685, %v1972
        %v2037 = vsel %vm1781, %v1689, %v1973
        %v2038 = vsel %vm1782, %v1691, %v1974
        %v2039 = vsel %vm1783, %v1693, %v1975
        %v2040 = vsel %vm1784, %v1695, %v1976
        %v2041 = vsel %vm1785, %v1699, %v1977
        %v2042 = vsel %vm1786, %v1701, %v1978
        %v2043 = vsel %vm1787, %v1703, %v1979
        %v2044 = vsel %vm1788, %v1705, %v1980
        %v2045 = vsel %vm1789, %v1709, %v1981
        %v2046 = vsel %vm1790, %v1711, %v1982
        %v2047 = vsel %vm1791, %v1713, %v1983
        %v2048 = vsel %vm1792, %v1715, %v1984
        %v2049 = vsel %vm1793, %v1719, %v1985
        %v2050 = vsel %vm1794, %v1721, %v1986
        %v2051 = vsel %vm1795, %v1723, %v1987
        %v2052 = vsel %vm1796, %v1725, %v1988
        %v2053 = vsel %vm1797, %v1729, %v1989
        %v2054 = vsel %vm1798, %v1731, %v1990
        %v2055 = vsel %vm1799, %v1733, %v1991
        %v2056 = vsel %vm1800, %v1735, %v1992
        %v2057 = vpack.c.bf16 %v1995, %v1993
        %v2058 = vpack.c.bf16 %v1996, %v1994
        %v2059 = vpack.c.bf16 %v1999, %v1997
        %v2060 = vpack.c.bf16 %v2000, %v1998
        %v2061 = vpack.c.bf16 %v2003, %v2001
        %v2062 = vpack.c.bf16 %v2004, %v2002
        %v2063 = vpack.c.bf16 %v2007, %v2005
        %v2064 = vpack.c.bf16 %v2008, %v2006
        %v2065 = vpack.c.bf16 %v2011, %v2009
        %v2066 = vpack.c.bf16 %v2012, %v2010
        %v2067 = vpack.c.bf16 %v2015, %v2013
        %v2068 = vpack.c.bf16 %v2016, %v2014
        %v2069 = vpack.c.bf16 %v2019, %v2017
        %v2070 = vpack.c.bf16 %v2020, %v2018
        %v2071 = vpack.c.bf16 %v2023, %v2021
        %v2072 = vpack.c.bf16 %v2024, %v2022
        %v2073 = vpack.c.bf16 %v2027, %v2025
        %v2074 = vpack.c.bf16 %v2028, %v2026
        %v2075 = vpack.c.bf16 %v2031, %v2029
        %v2076 = vpack.c.bf16 %v2032, %v2030
        %v2077 = vpack.c.bf16 %v2035, %v2033
        %v2078 = vpack.c.bf16 %v2036, %v2034
        %v2079 = vpack.c.bf16 %v2039, %v2037
        %v2080 = vpack.c.bf16 %v2040, %v2038
        %v2081 = vpack.c.bf16 %v2043, %v2041
        %v2082 = vpack.c.bf16 %v2044, %v2042
        %v2083 = vpack.c.bf16 %v2047, %v2045
        %v2084 = vpack.c.bf16 %v2048, %v2046
        %v2085 = vpack.c.bf16 %v2051, %v2049
        %v2086 = vpack.c.bf16 %v2052, %v2050
        %v2087 = vpack.c.bf16 %v2055, %v2053
        %v2088 = vpack.c.bf16 %v2056, %v2054
        %v2089 = vld [vmem:[#allocation9] sm:$0xff]
        %v2090 = vld [vmem:[#allocation9 + $0x8] sm:$0xff]
        %v2091 = vld [vmem:[#allocation9 + $0x10] sm:$0xff]
        %v2092 = vld [vmem:[#allocation9 + $0x18] sm:$0xff]
        %v2093 = vld [vmem:[#allocation9 + $0x20] sm:$0xff]
        %v2094 = vld [vmem:[#allocation9 + $0x28] sm:$0xff]
        %v2095 = vld [vmem:[#allocation9 + $0x30] sm:$0xff]
        %v2096 = vld [vmem:[#allocation9 + $0x38] sm:$0xff]
        %v2097 = vld [vmem:[#allocation9 + $0x40] sm:$0xff]
        %v2098 = vld [vmem:[#allocation9 + $0x48] sm:$0xff]
        %v2099 = vld [vmem:[#allocation9 + $0x50] sm:$0xff]
        %v2100 = vld [vmem:[#allocation9 + $0x58] sm:$0xff]
        %v2101 = vld [vmem:[#allocation9 + $0x60] sm:$0xff]
        %v2102 = vld [vmem:[#allocation9 + $0x68] sm:$0xff]
        %v2103 = vld [vmem:[#allocation9 + $0x70] sm:$0xff]
        %v2104 = vld [vmem:[#allocation9 + $0x78] sm:$0xff]
        %v2105 = vld [vmem:[#allocation9 + $0x80] sm:$0xff]
        %v2106 = vld [vmem:[#allocation9 + $0x88] sm:$0xff]
        %v2107 = vld [vmem:[#allocation9 + $0x90] sm:$0xff]
        %v2108 = vld [vmem:[#allocation9 + $0x98] sm:$0xff]
        %v2109 = vld [vmem:[#allocation9 + $0xa0] sm:$0xff]
        %v2110 = vld [vmem:[#allocation9 + $0xa8] sm:$0xff]
        %v2111 = vld [vmem:[#allocation9 + $0xb0] sm:$0xff]
        %v2112 = vld [vmem:[#allocation9 + $0xb8] sm:$0xff]
        %v2113 = vld [vmem:[#allocation9 + $0xc0] sm:$0xff]
        %v2114 = vld [vmem:[#allocation9 + $0xc8] sm:$0xff]
        %v2115 = vld [vmem:[#allocation9 + $0xd0] sm:$0xff]
        %v2116 = vld [vmem:[#allocation9 + $0xd8] sm:$0xff]
        %v2117 = vld [vmem:[#allocation9 + $0xe0] sm:$0xff]
        %v2118 = vld [vmem:[#allocation9 + $0xe8] sm:$0xff]
        %v2119 = vld [vmem:[#allocation9 + $0xf0] sm:$0xff]
        %v2120 = vld [vmem:[#allocation9 + $0xf8] sm:$0xff]
        %v2121 = vld [vmem:[%s6] sm:$0x3]
        %v2123 = vlaneseq
        %v2124 = vshrl.u32 %v2123, 7
        %v2125 = vsub.s32 0, %v2124
        %v2126 = vrot.slane %v2121, %v2125
        %v2127 = vlaneseq
        %v2128 = vshrl.u32 %v2127, 7
        %v2129 = vsub.s32 1, %v2128
        %v2130 = vrot.slane %v2121, %v2129
        %v2165 = vunpack.c.l.b16 %v2089
        %v2166 = vunpack.c.h.b16 %v2089
        %v2167 = vunpack.c.l.b16 %v2090
        %v2168 = vunpack.c.h.b16 %v2090
        %v2169 = vunpack.c.l.b16 %v2091
        %v2170 = vunpack.c.h.b16 %v2091
        %v2171 = vunpack.c.l.b16 %v2092
        %v2172 = vunpack.c.h.b16 %v2092
        %v2173 = vunpack.c.l.b16 %v2093
        %v2174 = vunpack.c.h.b16 %v2093
        %v2175 = vunpack.c.l.b16 %v2094
        %v2176 = vunpack.c.h.b16 %v2094
        %v2177 = vunpack.c.l.b16 %v2095
        %v2178 = vunpack.c.h.b16 %v2095
        %v2179 = vunpack.c.l.b16 %v2096
        %v2180 = vunpack.c.h.b16 %v2096
        %v2181 = vunpack.c.l.b16 %v2097
        %v2182 = vunpack.c.h.b16 %v2097
        %v2183 = vunpack.c.l.b16 %v2098
        %v2184 = vunpack.c.h.b16 %v2098
        %v2185 = vunpack.c.l.b16 %v2099
        %v2186 = vunpack.c.h.b16 %v2099
        %v2187 = vunpack.c.l.b16 %v2100
        %v2188 = vunpack.c.h.b16 %v2100
        %v2189 = vunpack.c.l.b16 %v2101
        %v2190 = vunpack.c.h.b16 %v2101
        %v2191 = vunpack.c.l.b16 %v2102
        %v2192 = vunpack.c.h.b16 %v2102
        %v2193 = vunpack.c.l.b16 %v2103
        %v2194 = vunpack.c.h.b16 %v2103
        %v2195 = vunpack.c.l.b16 %v2104
        %v2196 = vunpack.c.h.b16 %v2104
        %v2197 = vunpack.c.l.b16 %v2105
        %v2198 = vunpack.c.h.b16 %v2105
        %v2199 = vunpack.c.l.b16 %v2106
        %v2200 = vunpack.c.h.b16 %v2106
        %v2201 = vunpack.c.l.b16 %v2107
        %v2202 = vunpack.c.h.b16 %v2107
        %v2203 = vunpack.c.l.b16 %v2108
        %v2204 = vunpack.c.h.b16 %v2108
        %v2205 = vunpack.c.l.b16 %v2109
        %v2206 = vunpack.c.h.b16 %v2109
        %v2207 = vunpack.c.l.b16 %v2110
        %v2208 = vunpack.c.h.b16 %v2110
        %v2209 = vunpack.c.l.b16 %v2111
        %v2210 = vunpack.c.h.b16 %v2111
        %v2211 = vunpack.c.l.b16 %v2112
        %v2212 = vunpack.c.h.b16 %v2112
        %v2213 = vunpack.c.l.b16 %v2113
        %v2214 = vunpack.c.h.b16 %v2113
        %v2215 = vunpack.c.l.b16 %v2114
        %v2216 = vunpack.c.h.b16 %v2114
        %v2217 = vunpack.c.l.b16 %v2115
        %v2218 = vunpack.c.h.b16 %v2115
        %v2219 = vunpack.c.l.b16 %v2116
        %v2220 = vunpack.c.h.b16 %v2116
        %v2221 = vunpack.c.l.b16 %v2117
        %v2222 = vunpack.c.h.b16 %v2117
        %v2223 = vunpack.c.l.b16 %v2118
        %v2224 = vunpack.c.h.b16 %v2118
        %v2225 = vunpack.c.l.b16 %v2119
        %v2226 = vunpack.c.h.b16 %v2119
        %v2227 = vunpack.c.l.b16 %v2120
        %v2228 = vunpack.c.h.b16 %v2120
        %v2229 = vpack.c.b16 %v2167, %v2165
        %v2230 = vpack.c.b16 %v2168, %v2166
        %v2231 = vpack.c.b16 %v2171, %v2169
        %v2232 = vpack.c.b16 %v2172, %v2170
        %v2233 = vpack.c.b16 %v2175, %v2173
        %v2234 = vpack.c.b16 %v2176, %v2174
        %v2235 = vpack.c.b16 %v2179, %v2177
        %v2236 = vpack.c.b16 %v2180, %v2178
        %v2237 = vpack.c.b16 %v2183, %v2181
        %v2238 = vpack.c.b16 %v2184, %v2182
        %v2239 = vpack.c.b16 %v2187, %v2185
        %v2240 = vpack.c.b16 %v2188, %v2186
        %v2241 = vpack.c.b16 %v2191, %v2189
        %v2242 = vpack.c.b16 %v2192, %v2190
        %v2243 = vpack.c.b16 %v2195, %v2193
        %v2244 = vpack.c.b16 %v2196, %v2194
        %v2245 = vpack.c.b16 %v2199, %v2197
        %v2246 = vpack.c.b16 %v2200, %v2198
        %v2247 = vpack.c.b16 %v2203, %v2201
        %v2248 = vpack.c.b16 %v2204, %v2202
        %v2249 = vpack.c.b16 %v2207, %v2205
        %v2250 = vpack.c.b16 %v2208, %v2206
        %v2251 = vpack.c.b16 %v2211, %v2209
        %v2252 = vpack.c.b16 %v2212, %v2210
        %v2253 = vpack.c.b16 %v2215, %v2213
        %v2254 = vpack.c.b16 %v2216, %v2214
        %v2255 = vpack.c.b16 %v2219, %v2217
        %v2256 = vpack.c.b16 %v2220, %v2218
        %v2257 = vpack.c.b16 %v2223, %v2221
        %v2258 = vpack.c.b16 %v2224, %v2222
        %v2259 = vpack.c.b16 %v2227, %v2225
        %v2260 = vpack.c.b16 %v2228, %v2226
        %2293 = vmatprep.subr.bf16.mxu0 %v2244
        %2294 = vmatpush1.bf16.msra.mxu0 %v2243
        %2295 = vmatprep.subr.bf16.mxu0 %v2242
        %2296 = vmatpush1.bf16.msra.mxu0 %v2241
        %2297 = vmatprep.subr.bf16.mxu0 %v2240
        %2298 = vmatpush1.bf16.msra.mxu0 %v2239
        %2299 = vmatprep.subr.bf16.mxu0 %v2238
        %2300 = vmatpush1.bf16.msra.mxu0 %v2237
        %2301 = vmatprep.subr.bf16.mxu0 %v2236
        %2302 = vmatpush1.bf16.msra.mxu0 %v2235
        %2303 = vmatprep.subr.bf16.mxu0 %v2234
        %2304 = vmatpush1.bf16.msra.mxu0 %v2233
        %2305 = vmatprep.subr.bf16.mxu0 %v2232
        %2306 = vmatpush1.bf16.msra.mxu0 %v2231
        %2307 = vmatprep.subr.bf16.mxu0 %v2230
        %2308 = vmatpush1.bf16.msra.mxu0 %v2229
        %2309 = vmatprep.subr.bf16.mxu0 %v2260
        %2310 = vmatpush2.bf16.msra.mxu0 %v2259
        %2311 = vmatprep.subr.bf16.mxu0 %v2258
        %2312 = vmatpush2.bf16.msra.mxu0 %v2257
        %2313 = vmatprep.subr.bf16.mxu0 %v2256
        %2314 = vmatpush2.bf16.msra.mxu0 %v2255
        %2315 = vmatprep.subr.bf16.mxu0 %v2254
        %2316 = vmatpush2.bf16.msra.mxu0 %v2253
        %2317 = vmatprep.subr.bf16.mxu0 %v2252
        %2318 = vmatpush2.bf16.msra.mxu0 %v2251
        %2319 = vmatprep.subr.bf16.mxu0 %v2250
        %2320 = vmatpush2.bf16.msra.mxu0 %v2249
        %2321 = vmatprep.subr.bf16.mxu0 %v2248
        %2322 = vmatpush2.bf16.msra.mxu0 %v2247
        %2323 = vmatprep.subr.bf16.mxu0 %v2246
        %2324 = vmatpush2.bf16.msra.mxu0 %v2245
        %2325 = vmatprep.mubr.bf16.mxu0 %v2058
        %2326 = vmatmul.mubr.bf16.gmra.mxu0 %v2057
        %v2327 = vpop.f32.mrf.mxu0
        %v2328 = vadd.f32 %v2126, %v2327
        %v2329 = vpop.f32.mrf.mxu0
        %v2330 = vadd.f32 %v2130, %v2329
        %v2331 = vpop.f32.mrf.mxu0
        %v2332 = vadd.f32 %v2126, %v2331
        %v2333 = vpop.f32.mrf.mxu0
        %v2334 = vadd.f32 %v2130, %v2333
        %2335 = vmatprep.mubr.bf16.mxu0 %v2060
        %2336 = vmatmul.mubr.bf16.gmra.mxu0 %v2059
        %v2337 = vpop.f32.mrf.mxu0
        %v2338 = vadd.f32 %v2126, %v2337
        %v2339 = vpop.f32.mrf.mxu0
        %v2340 = vadd.f32 %v2130, %v2339
        %v2341 = vpop.f32.mrf.mxu0
        %v2342 = vadd.f32 %v2126, %v2341
        %v2343 = vpop.f32.mrf.mxu0
        %v2344 = vadd.f32 %v2130, %v2343
        %2345 = vmatprep.mubr.bf16.mxu0 %v2062
        %2346 = vmatmul.mubr.bf16.gmra.mxu0 %v2061
        %v2347 = vpop.f32.mrf.mxu0
        %v2348 = vadd.f32 %v2126, %v2347
        %v2349 = vpop.f32.mrf.mxu0
        %v2350 = vadd.f32 %v2130, %v2349
        %v2351 = vpop.f32.mrf.mxu0
        %v2352 = vadd.f32 %v2126, %v2351
        %v2353 = vpop.f32.mrf.mxu0
        %v2354 = vadd.f32 %v2130, %v2353
        %2355 = vmatprep.mubr.bf16.mxu0 %v2064
        %2356 = vmatmul.mubr.bf16.gmra.mxu0 %v2063
        %v2357 = vpop.f32.mrf.mxu0
        %v2358 = vadd.f32 %v2126, %v2357
        %v2359 = vpop.f32.mrf.mxu0
        %v2360 = vadd.f32 %v2130, %v2359
        %v2361 = vpop.f32.mrf.mxu0
        %v2362 = vadd.f32 %v2126, %v2361
        %v2363 = vpop.f32.mrf.mxu0
        %v2364 = vadd.f32 %v2130, %v2363
        %2365 = vmatprep.mubr.bf16.mxu0 %v2066
        %2366 = vmatmul.mubr.bf16.gmra.mxu0 %v2065
        %v2367 = vpop.f32.mrf.mxu0
        %v2368 = vadd.f32 %v2126, %v2367
        %v2369 = vpop.f32.mrf.mxu0
        %v2370 = vadd.f32 %v2130, %v2369
        %v2371 = vpop.f32.mrf.mxu0
        %v2372 = vadd.f32 %v2126, %v2371
        %v2373 = vpop.f32.mrf.mxu0
        %v2374 = vadd.f32 %v2130, %v2373
        %2375 = vmatprep.mubr.bf16.mxu0 %v2068
        %2376 = vmatmul.mubr.bf16.gmra.mxu0 %v2067
        %v2377 = vpop.f32.mrf.mxu0
        %v2378 = vadd.f32 %v2126, %v2377
        %v2379 = vpop.f32.mrf.mxu0
        %v2380 = vadd.f32 %v2130, %v2379
        %v2381 = vpop.f32.mrf.mxu0
        %v2382 = vadd.f32 %v2126, %v2381
        %v2383 = vpop.f32.mrf.mxu0
        %v2384 = vadd.f32 %v2130, %v2383
        %2385 = vmatprep.mubr.bf16.mxu0 %v2070
        %2386 = vmatmul.mubr.bf16.gmra.mxu0 %v2069
        %v2387 = vpop.f32.mrf.mxu0
        %v2388 = vadd.f32 %v2126, %v2387
        %v2389 = vpop.f32.mrf.mxu0
        %v2390 = vadd.f32 %v2130, %v2389
        %v2391 = vpop.f32.mrf.mxu0
        %v2392 = vadd.f32 %v2126, %v2391
        %v2393 = vpop.f32.mrf.mxu0
        %v2394 = vadd.f32 %v2130, %v2393
        %2395 = vmatprep.mubr.bf16.mxu0 %v2072
        %2396 = vmatmul.mubr.bf16.gmra.mxu0 %v2071
        %v2397 = vpop.f32.mrf.mxu0
        %v2398 = vadd.f32 %v2126, %v2397
        %v2399 = vpop.f32.mrf.mxu0
        %v2400 = vadd.f32 %v2130, %v2399
        %v2401 = vpop.f32.mrf.mxu0
        %v2402 = vadd.f32 %v2126, %v2401
        %v2403 = vpop.f32.mrf.mxu0
        %v2404 = vadd.f32 %v2130, %v2403
        %2405 = vmatprep.mubr.bf16.mxu0 %v2074
        %2406 = vmatmul.mubr.bf16.gmra.mxu0 %v2073
        %v2407 = vpop.f32.mrf.mxu0
        %v2408 = vadd.f32 %v2126, %v2407
        %v2409 = vpop.f32.mrf.mxu0
        %v2410 = vadd.f32 %v2130, %v2409
        %v2411 = vpop.f32.mrf.mxu0
        %v2412 = vadd.f32 %v2126, %v2411
        %v2413 = vpop.f32.mrf.mxu0
        %v2414 = vadd.f32 %v2130, %v2413
        %2415 = vmatprep.mubr.bf16.mxu0 %v2076
        %2416 = vmatmul.mubr.bf16.gmra.mxu0 %v2075
        %v2417 = vpop.f32.mrf.mxu0
        %v2418 = vadd.f32 %v2126, %v2417
        %v2419 = vpop.f32.mrf.mxu0
        %v2420 = vadd.f32 %v2130, %v2419
        %v2421 = vpop.f32.mrf.mxu0
        %v2422 = vadd.f32 %v2126, %v2421
        %v2423 = vpop.f32.mrf.mxu0
        %v2424 = vadd.f32 %v2130, %v2423
        %2425 = vmatprep.mubr.bf16.mxu0 %v2078
        %2426 = vmatmul.mubr.bf16.gmra.mxu0 %v2077
        %v2427 = vpop.f32.mrf.mxu0
        %v2428 = vadd.f32 %v2126, %v2427
        %v2429 = vpop.f32.mrf.mxu0
        %v2430 = vadd.f32 %v2130, %v2429
        %v2431 = vpop.f32.mrf.mxu0
        %v2432 = vadd.f32 %v2126, %v2431
        %v2433 = vpop.f32.mrf.mxu0
        %v2434 = vadd.f32 %v2130, %v2433
        %2435 = vmatprep.mubr.bf16.mxu0 %v2080
        %2436 = vmatmul.mubr.bf16.gmra.mxu0 %v2079
        %v2437 = vpop.f32.mrf.mxu0
        %v2438 = vadd.f32 %v2126, %v2437
        %v2439 = vpop.f32.mrf.mxu0
        %v2440 = vadd.f32 %v2130, %v2439
        %v2441 = vpop.f32.mrf.mxu0
        %v2442 = vadd.f32 %v2126, %v2441
        %v2443 = vpop.f32.mrf.mxu0
        %v2444 = vadd.f32 %v2130, %v2443
        %2445 = vmatprep.mubr.bf16.mxu0 %v2082
        %2446 = vmatmul.mubr.bf16.gmra.mxu0 %v2081
        %v2447 = vpop.f32.mrf.mxu0
        %v2448 = vadd.f32 %v2126, %v2447
        %v2449 = vpop.f32.mrf.mxu0
        %v2450 = vadd.f32 %v2130, %v2449
        %v2451 = vpop.f32.mrf.mxu0
        %v2452 = vadd.f32 %v2126, %v2451
        %v2453 = vpop.f32.mrf.mxu0
        %v2454 = vadd.f32 %v2130, %v2453
        %2455 = vmatprep.mubr.bf16.mxu0 %v2084
        %2456 = vmatmul.mubr.bf16.gmra.mxu0 %v2083
        %v2457 = vpop.f32.mrf.mxu0
        %v2458 = vadd.f32 %v2126, %v2457
        %v2459 = vpop.f32.mrf.mxu0
        %v2460 = vadd.f32 %v2130, %v2459
        %v2461 = vpop.f32.mrf.mxu0
        %v2462 = vadd.f32 %v2126, %v2461
        %v2463 = vpop.f32.mrf.mxu0
        %v2464 = vadd.f32 %v2130, %v2463
        %2465 = vmatprep.mubr.bf16.mxu0 %v2086
        %2466 = vmatmul.mubr.bf16.gmra.mxu0 %v2085
        %v2467 = vpop.f32.mrf.mxu0
        %v2468 = vadd.f32 %v2126, %v2467
        %v2469 = vpop.f32.mrf.mxu0
        %v2470 = vadd.f32 %v2130, %v2469
        %v2471 = vpop.f32.mrf.mxu0
        %v2472 = vadd.f32 %v2126, %v2471
        %v2473 = vpop.f32.mrf.mxu0
        %v2474 = vadd.f32 %v2130, %v2473
        %2475 = vmatprep.mubr.bf16.mxu0 %v2088
        %2476 = vmatmul.mubr.bf16.gmra.mxu0 %v2087
        %v2477 = vpop.f32.mrf.mxu0
        %v2478 = vadd.f32 %v2126, %v2477
        %v2479 = vpop.f32.mrf.mxu0
        %v2480 = vadd.f32 %v2130, %v2479
        %v2481 = vpop.f32.mrf.mxu0
        %v2482 = vadd.f32 %v2126, %v2481
        %v2483 = vpop.f32.mrf.mxu0
        %v2484 = vadd.f32 %v2130, %v2483
        %2485 = vdwg.mxu0
        %vm2486 = vcmp.gt.f32.partialorder %v2328, 0.0
        %vm2487 = vcmp.gt.f32.partialorder %v2330, 0.0
        %vm2488 = vcmp.gt.f32.partialorder %v2332, 0.0
        %vm2489 = vcmp.gt.f32.partialorder %v2334, 0.0
        %vm2490 = vcmp.gt.f32.partialorder %v2338, 0.0
        %vm2491 = vcmp.gt.f32.partialorder %v2340, 0.0
        %vm2492 = vcmp.gt.f32.partialorder %v2342, 0.0
        %vm2493 = vcmp.gt.f32.partialorder %v2344, 0.0
        %vm2494 = vcmp.gt.f32.partialorder %v2348, 0.0
        %vm2495 = vcmp.gt.f32.partialorder %v2350, 0.0
        %vm2496 = vcmp.gt.f32.partialorder %v2352, 0.0
        %vm2497 = vcmp.gt.f32.partialorder %v2354, 0.0
        %vm2498 = vcmp.gt.f32.partialorder %v2358, 0.0
        %vm2499 = vcmp.gt.f32.partialorder %v2360, 0.0
        %vm2500 = vcmp.gt.f32.partialorder %v2362, 0.0
        %vm2501 = vcmp.gt.f32.partialorder %v2364, 0.0
        %vm2502 = vcmp.gt.f32.partialorder %v2368, 0.0
        %vm2503 = vcmp.gt.f32.partialorder %v2370, 0.0
        %vm2504 = vcmp.gt.f32.partialorder %v2372, 0.0
        %vm2505 = vcmp.gt.f32.partialorder %v2374, 0.0
        %vm2506 = vcmp.gt.f32.partialorder %v2378, 0.0
        %vm2507 = vcmp.gt.f32.partialorder %v2380, 0.0
        %vm2508 = vcmp.gt.f32.partialorder %v2382, 0.0
        %vm2509 = vcmp.gt.f32.partialorder %v2384, 0.0
        %vm2510 = vcmp.gt.f32.partialorder %v2388, 0.0
        %vm2511 = vcmp.gt.f32.partialorder %v2390, 0.0
        %vm2512 = vcmp.gt.f32.partialorder %v2392, 0.0
        %vm2513 = vcmp.gt.f32.partialorder %v2394, 0.0
        %vm2514 = vcmp.gt.f32.partialorder %v2398, 0.0
        %vm2515 = vcmp.gt.f32.partialorder %v2400, 0.0
        %vm2516 = vcmp.gt.f32.partialorder %v2402, 0.0
        %vm2517 = vcmp.gt.f32.partialorder %v2404, 0.0
        %vm2518 = vcmp.gt.f32.partialorder %v2408, 0.0
        %vm2519 = vcmp.gt.f32.partialorder %v2410, 0.0
        %vm2520 = vcmp.gt.f32.partialorder %v2412, 0.0
        %vm2521 = vcmp.gt.f32.partialorder %v2414, 0.0
        %vm2522 = vcmp.gt.f32.partialorder %v2418, 0.0
        %vm2523 = vcmp.gt.f32.partialorder %v2420, 0.0
        %vm2524 = vcmp.gt.f32.partialorder %v2422, 0.0
        %vm2525 = vcmp.gt.f32.partialorder %v2424, 0.0
        %vm2526 = vcmp.gt.f32.partialorder %v2428, 0.0
        %vm2527 = vcmp.gt.f32.partialorder %v2430, 0.0
        %vm2528 = vcmp.gt.f32.partialorder %v2432, 0.0
        %vm2529 = vcmp.gt.f32.partialorder %v2434, 0.0
        %vm2530 = vcmp.gt.f32.partialorder %v2438, 0.0
        %vm2531 = vcmp.gt.f32.partialorder %v2440, 0.0
        %vm2532 = vcmp.gt.f32.partialorder %v2442, 0.0
        %vm2533 = vcmp.gt.f32.partialorder %v2444, 0.0
        %vm2534 = vcmp.gt.f32.partialorder %v2448, 0.0
        %vm2535 = vcmp.gt.f32.partialorder %v2450, 0.0
        %vm2536 = vcmp.gt.f32.partialorder %v2452, 0.0
        %vm2537 = vcmp.gt.f32.partialorder %v2454, 0.0
        %vm2538 = vcmp.gt.f32.partialorder %v2458, 0.0
        %vm2539 = vcmp.gt.f32.partialorder %v2460, 0.0
        %vm2540 = vcmp.gt.f32.partialorder %v2462, 0.0
        %vm2541 = vcmp.gt.f32.partialorder %v2464, 0.0
        %vm2542 = vcmp.gt.f32.partialorder %v2468, 0.0
        %vm2543 = vcmp.gt.f32.partialorder %v2470, 0.0
        %vm2544 = vcmp.gt.f32.partialorder %v2472, 0.0
        %vm2545 = vcmp.gt.f32.partialorder %v2474, 0.0
        %vm2546 = vcmp.gt.f32.partialorder %v2478, 0.0
        %vm2547 = vcmp.gt.f32.partialorder %v2480, 0.0
        %vm2548 = vcmp.gt.f32.partialorder %v2482, 0.0
        %vm2549 = vcmp.gt.f32.partialorder %v2484, 0.0
        %v2550 = vmul.f32 %v2328, 1.442695
        %v2551 = vpow.pop %v2550
        %v2552 = vmul.f32 %v2330, 1.442695
        %v2553 = vpow.pop %v2552
        %v2554 = vmul.f32 %v2332, 1.442695
        %v2555 = vpow.pop %v2554
        %v2556 = vmul.f32 %v2334, 1.442695
        %v2557 = vpow.pop %v2556
        %v2558 = vmul.f32 %v2338, 1.442695
        %v2559 = vpow.pop %v2558
        %v2560 = vmul.f32 %v2340, 1.442695
        %v2561 = vpow.pop %v2560
        %v2562 = vmul.f32 %v2342, 1.442695
        %v2563 = vpow.pop %v2562
        %v2564 = vmul.f32 %v2344, 1.442695
        %v2565 = vpow.pop %v2564
        %v2566 = vmul.f32 %v2348, 1.442695
        %v2567 = vpow.pop %v2566
        %v2568 = vmul.f32 %v2350, 1.442695
        %v2569 = vpow.pop %v2568
        %v2570 = vmul.f32 %v2352, 1.442695
        %v2571 = vpow.pop %v2570
        %v2572 = vmul.f32 %v2354, 1.442695
        %v2573 = vpow.pop %v2572
        %v2574 = vmul.f32 %v2358, 1.442695
        %v2575 = vpow.pop %v2574
        %v2576 = vmul.f32 %v2360, 1.442695
        %v2577 = vpow.pop %v2576
        %v2578 = vmul.f32 %v2362, 1.442695
        %v2579 = vpow.pop %v2578
        %v2580 = vmul.f32 %v2364, 1.442695
        %v2581 = vpow.pop %v2580
        %v2582 = vmul.f32 %v2368, 1.442695
        %v2583 = vpow.pop %v2582
        %v2584 = vmul.f32 %v2370, 1.442695
        %v2585 = vpow.pop %v2584
        %v2586 = vmul.f32 %v2372, 1.442695
        %v2587 = vpow.pop %v2586
        %v2588 = vmul.f32 %v2374, 1.442695
        %v2589 = vpow.pop %v2588
        %v2590 = vmul.f32 %v2378, 1.442695
        %v2591 = vpow.pop %v2590
        %v2592 = vmul.f32 %v2380, 1.442695
        %v2593 = vpow.pop %v2592
        %v2594 = vmul.f32 %v2382, 1.442695
        %v2595 = vpow.pop %v2594
        %v2596 = vmul.f32 %v2384, 1.442695
        %v2597 = vpow.pop %v2596
        %v2598 = vmul.f32 %v2388, 1.442695
        %v2599 = vpow.pop %v2598
        %v2600 = vmul.f32 %v2390, 1.442695
        %v2601 = vpow.pop %v2600
        %v2602 = vmul.f32 %v2392, 1.442695
        %v2603 = vpow.pop %v2602
        %v2604 = vmul.f32 %v2394, 1.442695
        %v2605 = vpow.pop %v2604
        %v2606 = vmul.f32 %v2398, 1.442695
        %v2607 = vpow.pop %v2606
        %v2608 = vmul.f32 %v2400, 1.442695
        %v2609 = vpow.pop %v2608
        %v2610 = vmul.f32 %v2402, 1.442695
        %v2611 = vpow.pop %v2610
        %v2612 = vmul.f32 %v2404, 1.442695
        %v2613 = vpow.pop %v2612
        %v2614 = vmul.f32 %v2408, 1.442695
        %v2615 = vpow.pop %v2614
        %v2616 = vmul.f32 %v2410, 1.442695
        %v2617 = vpow.pop %v2616
        %v2618 = vmul.f32 %v2412, 1.442695
        %v2619 = vpow.pop %v2618
        %v2620 = vmul.f32 %v2414, 1.442695
        %v2621 = vpow.pop %v2620
        %v2622 = vmul.f32 %v2418, 1.442695
        %v2623 = vpow.pop %v2622
        %v2624 = vmul.f32 %v2420, 1.442695
        %v2625 = vpow.pop %v2624
        %v2626 = vmul.f32 %v2422, 1.442695
        %v2627 = vpow.pop %v2626
        %v2628 = vmul.f32 %v2424, 1.442695
        %v2629 = vpow.pop %v2628
        %v2630 = vmul.f32 %v2428, 1.442695
        %v2631 = vpow.pop %v2630
        %v2632 = vmul.f32 %v2430, 1.442695
        %v2633 = vpow.pop %v2632
        %v2634 = vmul.f32 %v2432, 1.442695
        %v2635 = vpow.pop %v2634
        %v2636 = vmul.f32 %v2434, 1.442695
        %v2637 = vpow.pop %v2636
        %v2638 = vmul.f32 %v2438, 1.442695
        %v2639 = vpow.pop %v2638
        %v2640 = vmul.f32 %v2440, 1.442695
        %v2641 = vpow.pop %v2640
        %v2642 = vmul.f32 %v2442, 1.442695
        %v2643 = vpow.pop %v2642
        %v2644 = vmul.f32 %v2444, 1.442695
        %v2645 = vpow.pop %v2644
        %v2646 = vmul.f32 %v2448, 1.442695
        %v2647 = vpow.pop %v2646
        %v2648 = vmul.f32 %v2450, 1.442695
        %v2649 = vpow.pop %v2648
        %v2650 = vmul.f32 %v2452, 1.442695
        %v2651 = vpow.pop %v2650
        %v2652 = vmul.f32 %v2454, 1.442695
        %v2653 = vpow.pop %v2652
        %v2654 = vmul.f32 %v2458, 1.442695
        %v2655 = vpow.pop %v2654
        %v2656 = vmul.f32 %v2460, 1.442695
        %v2657 = vpow.pop %v2656
        %v2658 = vmul.f32 %v2462, 1.442695
        %v2659 = vpow.pop %v2658
        %v2660 = vmul.f32 %v2464, 1.442695
        %v2661 = vpow.pop %v2660
        %v2662 = vmul.f32 %v2468, 1.442695
        %v2663 = vpow.pop %v2662
        %v2664 = vmul.f32 %v2470, 1.442695
        %v2665 = vpow.pop %v2664
        %v2666 = vmul.f32 %v2472, 1.442695
        %v2667 = vpow.pop %v2666
        %v2668 = vmul.f32 %v2474, 1.442695
        %v2669 = vpow.pop %v2668
        %v2670 = vmul.f32 %v2478, 1.442695
        %v2671 = vpow.pop %v2670
        %v2672 = vmul.f32 %v2480, 1.442695
        %v2673 = vpow.pop %v2672
        %v2674 = vmul.f32 %v2482, 1.442695
        %v2675 = vpow.pop %v2674
        %v2676 = vmul.f32 %v2484, 1.442695
        %v2677 = vpow.pop %v2676
        %v2678 = vsub.f32 %v2551, 1.0
        %v2679 = vsub.f32 %v2553, 1.0
        %v2680 = vsub.f32 %v2555, 1.0
        %v2681 = vsub.f32 %v2557, 1.0
        %v2682 = vsub.f32 %v2559, 1.0
        %v2683 = vsub.f32 %v2561, 1.0
        %v2684 = vsub.f32 %v2563, 1.0
        %v2685 = vsub.f32 %v2565, 1.0
        %v2686 = vsub.f32 %v2567, 1.0
        %v2687 = vsub.f32 %v2569, 1.0
        %v2688 = vsub.f32 %v2571, 1.0
        %v2689 = vsub.f32 %v2573, 1.0
        %v2690 = vsub.f32 %v2575, 1.0
        %v2691 = vsub.f32 %v2577, 1.0
        %v2692 = vsub.f32 %v2579, 1.0
        %v2693 = vsub.f32 %v2581, 1.0
        %v2694 = vsub.f32 %v2583, 1.0
        %v2695 = vsub.f32 %v2585, 1.0
        %v2696 = vsub.f32 %v2587, 1.0
        %v2697 = vsub.f32 %v2589, 1.0
        %v2698 = vsub.f32 %v2591, 1.0
        %v2699 = vsub.f32 %v2593, 1.0
        %v2700 = vsub.f32 %v2595, 1.0
        %v2701 = vsub.f32 %v2597, 1.0
        %v2702 = vsub.f32 %v2599, 1.0
        %v2703 = vsub.f32 %v2601, 1.0
        %v2704 = vsub.f32 %v2603, 1.0
        %v2705 = vsub.f32 %v2605, 1.0
        %v2706 = vsub.f32 %v2607, 1.0
        %v2707 = vsub.f32 %v2609, 1.0
        %v2708 = vsub.f32 %v2611, 1.0
        %v2709 = vsub.f32 %v2613, 1.0
        %v2710 = vsub.f32 %v2615, 1.0
        %v2711 = vsub.f32 %v2617, 1.0
        %v2712 = vsub.f32 %v2619, 1.0
        %v2713 = vsub.f32 %v2621, 1.0
        %v2714 = vsub.f32 %v2623, 1.0
        %v2715 = vsub.f32 %v2625, 1.0
        %v2716 = vsub.f32 %v2627, 1.0
        %v2717 = vsub.f32 %v2629, 1.0
        %v2718 = vsub.f32 %v2631, 1.0
        %v2719 = vsub.f32 %v2633, 1.0
        %v2720 = vsub.f32 %v2635, 1.0
        %v2721 = vsub.f32 %v2637, 1.0
        %v2722 = vsub.f32 %v2639, 1.0
        %v2723 = vsub.f32 %v2641, 1.0
        %v2724 = vsub.f32 %v2643, 1.0
        %v2725 = vsub.f32 %v2645, 1.0
        %v2726 = vsub.f32 %v2647, 1.0
        %v2727 = vsub.f32 %v2649, 1.0
        %v2728 = vsub.f32 %v2651, 1.0
        %v2729 = vsub.f32 %v2653, 1.0
        %v2730 = vsub.f32 %v2655, 1.0
        %v2731 = vsub.f32 %v2657, 1.0
        %v2732 = vsub.f32 %v2659, 1.0
        %v2733 = vsub.f32 %v2661, 1.0
        %v2734 = vsub.f32 %v2663, 1.0
        %v2735 = vsub.f32 %v2665, 1.0
        %v2736 = vsub.f32 %v2667, 1.0
        %v2737 = vsub.f32 %v2669, 1.0
        %v2738 = vsub.f32 %v2671, 1.0
        %v2739 = vsub.f32 %v2673, 1.0
        %v2740 = vsub.f32 %v2675, 1.0
        %v2741 = vsub.f32 %v2677, 1.0
        %v2742 = vsel %vm2486, %v2328, %v2678
        %v2743 = vsel %vm2487, %v2330, %v2679
        %v2744 = vsel %vm2488, %v2332, %v2680
        %v2745 = vsel %vm2489, %v2334, %v2681
        %v2746 = vsel %vm2490, %v2338, %v2682
        %v2747 = vsel %vm2491, %v2340, %v2683
        %v2748 = vsel %vm2492, %v2342, %v2684
        %v2749 = vsel %vm2493, %v2344, %v2685
        %v2750 = vsel %vm2494, %v2348, %v2686
        %v2751 = vsel %vm2495, %v2350, %v2687
        %v2752 = vsel %vm2496, %v2352, %v2688
        %v2753 = vsel %vm2497, %v2354, %v2689
        %v2754 = vsel %vm2498, %v2358, %v2690
        %v2755 = vsel %vm2499, %v2360, %v2691
        %v2756 = vsel %vm2500, %v2362, %v2692
        %v2757 = vsel %vm2501, %v2364, %v2693
        %v2758 = vsel %vm2502, %v2368, %v2694
        %v2759 = vsel %vm2503, %v2370, %v2695
        %v2760 = vsel %vm2504, %v2372, %v2696
        %v2761 = vsel %vm2505, %v2374, %v2697
        %v2762 = vsel %vm2506, %v2378, %v2698
        %v2763 = vsel %vm2507, %v2380, %v2699
        %v2764 = vsel %vm2508, %v2382, %v2700
        %v2765 = vsel %vm2509, %v2384, %v2701
        %v2766 = vsel %vm2510, %v2388, %v2702
        %v2767 = vsel %vm2511, %v2390, %v2703
        %v2768 = vsel %vm2512, %v2392, %v2704
        %v2769 = vsel %vm2513, %v2394, %v2705
        %v2770 = vsel %vm2514, %v2398, %v2706
        %v2771 = vsel %vm2515, %v2400, %v2707
        %v2772 = vsel %vm2516, %v2402, %v2708
        %v2773 = vsel %vm2517, %v2404, %v2709
        %v2774 = vsel %vm2518, %v2408, %v2710
        %v2775 = vsel %vm2519, %v2410, %v2711
        %v2776 = vsel %vm2520, %v2412, %v2712
        %v2777 = vsel %vm2521, %v2414, %v2713
        %v2778 = vsel %vm2522, %v2418, %v2714
        %v2779 = vsel %vm2523, %v2420, %v2715
        %v2780 = vsel %vm2524, %v2422, %v2716
        %v2781 = vsel %vm2525, %v2424, %v2717
        %v2782 = vsel %vm2526, %v2428, %v2718
        %v2783 = vsel %vm2527, %v2430, %v2719
        %v2784 = vsel %vm2528, %v2432, %v2720
        %v2785 = vsel %vm2529, %v2434, %v2721
        %v2786 = vsel %vm2530, %v2438, %v2722
        %v2787 = vsel %vm2531, %v2440, %v2723
        %v2788 = vsel %vm2532, %v2442, %v2724
        %v2789 = vsel %vm2533, %v2444, %v2725
        %v2790 = vsel %vm2534, %v2448, %v2726
        %v2791 = vsel %vm2535, %v2450, %v2727
        %v2792 = vsel %vm2536, %v2452, %v2728
        %v2793 = vsel %vm2537, %v2454, %v2729
        %v2794 = vsel %vm2538, %v2458, %v2730
        %v2795 = vsel %vm2539, %v2460, %v2731
        %v2796 = vsel %vm2540, %v2462, %v2732
        %v2797 = vsel %vm2541, %v2464, %v2733
        %v2798 = vsel %vm2542, %v2468, %v2734
        %v2799 = vsel %vm2543, %v2470, %v2735
        %v2800 = vsel %vm2544, %v2472, %v2736
        %v2801 = vsel %vm2545, %v2474, %v2737
        %v2802 = vsel %vm2546, %v2478, %v2738
        %v2803 = vsel %vm2547, %v2480, %v2739
        %v2804 = vsel %vm2548, %v2482, %v2740
        %v2805 = vsel %vm2549, %v2484, %v2741
        %v2806 = vpack.c.bf16 %v2744, %v2742
        %v2807 = vpack.c.bf16 %v2745, %v2743
        %v2808 = vpack.c.bf16 %v2748, %v2746
        %v2809 = vpack.c.bf16 %v2749, %v2747
        %v2810 = vpack.c.bf16 %v2752, %v2750
        %v2811 = vpack.c.bf16 %v2753, %v2751
        %v2812 = vpack.c.bf16 %v2756, %v2754
        %v2813 = vpack.c.bf16 %v2757, %v2755
        %v2814 = vpack.c.bf16 %v2760, %v2758
        %v2815 = vpack.c.bf16 %v2761, %v2759
        %v2816 = vpack.c.bf16 %v2764, %v2762
        %v2817 = vpack.c.bf16 %v2765, %v2763
        %v2818 = vpack.c.bf16 %v2768, %v2766
        %v2819 = vpack.c.bf16 %v2769, %v2767
        %v2820 = vpack.c.bf16 %v2772, %v2770
        %v2821 = vpack.c.bf16 %v2773, %v2771
        %v2822 = vpack.c.bf16 %v2776, %v2774
        %v2823 = vpack.c.bf16 %v2777, %v2775
        %v2824 = vpack.c.bf16 %v2780, %v2778
        %v2825 = vpack.c.bf16 %v2781, %v2779
        %v2826 = vpack.c.bf16 %v2784, %v2782
        %v2827 = vpack.c.bf16 %v2785, %v2783
        %v2828 = vpack.c.bf16 %v2788, %v2786
        %v2829 = vpack.c.bf16 %v2789, %v2787
        %v2830 = vpack.c.bf16 %v2792, %v2790
        %v2831 = vpack.c.bf16 %v2793, %v2791
        %v2832 = vpack.c.bf16 %v2796, %v2794
        %v2833 = vpack.c.bf16 %v2797, %v2795
        %v2834 = vpack.c.bf16 %v2800, %v2798
        %v2835 = vpack.c.bf16 %v2801, %v2799
        %v2836 = vpack.c.bf16 %v2804, %v2802
        %v2837 = vpack.c.bf16 %v2805, %v2803
        %v2838 = vld [vmem:[%s7] sm:$0xff]
        %v2840 = vunpack.c.l.b16 %v2838
        %v2841 = vunpack.c.h.b16 %v2838
        %v2842 = vpack.c.b16 %v2840, %v2840
        %v2843 = vpack.c.b16 %v2841, %v2841
        %2846 = vmatprep.subr.bf16.mxu0 %v2821
        %2847 = vmatpush1.bf16.xpose.msra.mxu0 %v2820
        %2848 = vmatprep.subr.bf16.mxu0 %v2819
        %2849 = vmatpush1.bf16.xpose.msra.mxu0 %v2818
        %2850 = vmatprep.subr.bf16.mxu0 %v2817
        %2851 = vmatpush1.bf16.xpose.msra.mxu0 %v2816
        %2852 = vmatprep.subr.bf16.mxu0 %v2815
        %2853 = vmatpush1.bf16.xpose.msra.mxu0 %v2814
        %2854 = vmatprep.subr.bf16.mxu0 %v2813
        %2855 = vmatpush1.bf16.xpose.msra.mxu0 %v2812
        %2856 = vmatprep.subr.bf16.mxu0 %v2811
        %2857 = vmatpush1.bf16.xpose.msra.mxu0 %v2810
        %2858 = vmatprep.subr.bf16.mxu0 %v2809
        %2859 = vmatpush1.bf16.xpose.msra.mxu0 %v2808
        %2860 = vmatprep.subr.bf16.mxu0 %v2807
        %2861 = vmatpush1.bf16.xpose.msra.mxu0 %v2806
        %2862 = vmatprep.subr.bf16.mxu0 %v2837
        %2863 = vmatpush2.bf16.xpose.msra.mxu0 %v2836
        %2864 = vmatprep.subr.bf16.mxu0 %v2835
        %2865 = vmatpush2.bf16.xpose.msra.mxu0 %v2834
        %2866 = vmatprep.subr.bf16.mxu0 %v2833
        %2867 = vmatpush2.bf16.xpose.msra.mxu0 %v2832
        %2868 = vmatprep.subr.bf16.mxu0 %v2831
        %2869 = vmatpush2.bf16.xpose.msra.mxu0 %v2830
        %2870 = vmatprep.subr.bf16.mxu0 %v2829
        %2871 = vmatpush2.bf16.xpose.msra.mxu0 %v2828
        %2872 = vmatprep.subr.bf16.mxu0 %v2827
        %2873 = vmatpush2.bf16.xpose.msra.mxu0 %v2826
        %2874 = vmatprep.subr.bf16.mxu0 %v2825
        %2875 = vmatpush2.bf16.xpose.msra.mxu0 %v2824
        %2876 = vmatprep.subr.bf16.mxu0 %v2823
        %2877 = vmatpush2.bf16.xpose.msra.mxu0 %v2822
        %2878 = vmatprep.mubr.bf16.mxu0 %v2843
        %2879 = vmatmul.mubr.bf16.gmra.mxu0 %v2842
        %v2880 = vpop.f32.mrf.mxu0
        %v2881 = vadd.f32 0.0, %v2880
        %v2882 = vpop.f32.mrf.mxu0
        %v2883 = vadd.f32 0.0, %v2882
        %v2884 = vpop.f32.mrf.mxu0
        %v2885 = vpop.f32.mrf.mxu0
        %2886 = vdwg.mxu0
        %s2887 = sld [smem:[#allocation2]]
        %v2888 = vstv %s2887
        %v2889 = vadd.f32 %v2881, %v2888
        %v2890 = vadd.f32 %v2883, %v2888
        %v2893 = vcombine.low %v2889, %v2890
        %v2895 = vunpack.c.l.s4 1966171168
        %v2896 = vunpack.c.0.s8 %v2895
        %v2897 = vlaneseq
        %v2898 = vshrl.u32 %v2897, 7
        %v2899 = vsub.s32 %v2896, %v2898
        %v2900 = vrot.slane %v2893, %v2899
        %v2902 = vunpack.c.l.s4 1966171168
        %v2903 = vunpack.c.0.s8 %v2902
        %v2904 = vlaneseq
        %v2905 = vshrl.u32 %v2904, 7
        %v2906 = vsub.s32 %v2903, %v2905
        %v2907 = vrot.slane %v2900, %v2906
        %v2909 = vlaneseq
        %vm2910 = vcmp.ge.s32.totalorder %v2909, 0
        %vm2911 = vcmp.lt.s32.totalorder %v2909, 256
        %vm2912 = vmand %vm2910, %vm2911
        %2913 = vst.msk [vmem:[%s396] sm:$0x3] %vm2912, %v2907
        %s2914 = sand.u32 %s231, 1
        %s2915 = scalar_lea.sflag [#allocation5], %s2914
        %s2916 = sand.u32 %s231, 1
        %s2917 = smul.addr %s2916, 2
        %s2918 = scalar_lea.vmem [#allocation11], %s2917
        // Predicated region
        $region73: #{tpu_custom_call.1} parent=55 // pred_check
          %p2919 = pneg %p241
        $region74: #{tpu_custom_call.1} parent=55 // pred_check_branch
          %2921 = sbr.rel (%p2919) target = $region76
        $region75: #{tpu_custom_call.1} parent=55 // pred_region
          %s2922 = smul.u32 2, %s29
          %s2924 = ssub.s32 32, 32
          %2925 = vsyncadd %s2915, %s2924
          %s2926 = smul.addr %s2922, 16
          %s2927 = scalar_lea.hbm %s9, %s2926
          %s2929 = sshll.u32 %s2918, 4
          %s2930 = int_to_ptr.vmem [resolvable:$true] %s2929
          %2932 = dma.vmem_to_hbm [thread:$0]  %s2930, 32, %s2927, %s2915
        $region76: #{tpu_custom_call.1} parent=55 // pred_fallthru
          _
      $region56: #{tpu_custom_call.1} parent=5 // pred_fallthru
        _
      %p2933 = scmp.le.s32.totalorder 2, %s24
      // Predicated region
      $region77: #{tpu_custom_call.1} parent=5 // pred_check
        %p2934 = pneg %p2933
      $region78: #{tpu_custom_call.1} parent=5 // pred_check_branch
        %2936 = sbr.rel (%p2934) target = $region80
      $region79: #{tpu_custom_call.1} parent=5 // pred_region
        %s2937 = ssub.s32 %s24, 2
        // Predicated region
        $region81: #{tpu_custom_call.1} parent=79 // pred_check
          %p2938 = pneg %p247
        $region82: #{tpu_custom_call.1} parent=79 // pred_check_branch
          %2940 = sbr.rel (%p2938) target = $region84
        $region83: #{tpu_custom_call.1} parent=79 // pred_region
          %s2941 = sand.u32 %s232, 1
          %s2942 = scalar_lea.sflag [#allocation5], %s2941
          %s2943 = sand.u32 %s232, 1
          %s2944 = smul.addr %s2943, 2
          %s2945 = scalar_lea.vmem [#allocation11], %s2944
          %2946 = dma.done %s2942, 32
        $region84: #{tpu_custom_call.1} parent=79 // pred_fallthru
          _
      $region80: #{tpu_custom_call.1} parent=5 // pred_fallthru
        _
    $region6: #{tpu_custom_call.1} parent=1 // loop_footer
      %s28 = sadd.s32 1, %s24
    $region7: #{tpu_custom_call.1} parent=1 // loop_footer_branch
      %23 = sbr.rel target = $region3
    $region8: #{tpu_custom_call.1} parent=1 // loop_exit
      _
    %2947 = vsyncpa [#allocation4], 1
    %s2948 = scalar_lea.sflag [#allocation4], 1
    %2949 = vsyncpa %s2948, 1
    %2950 = vsyncpa [#allocation7], 1
    %2951 = vsyncpa [#allocation10], 1
    %2952 = vsyncpa [#allocation5], 1
    %s2953 = scalar_lea.sflag [#allocation5], 1
    %2954 = vsyncpa %s2953, 1

</llo_original>
